<compile_context>
chip_gen: v7x
topology: tpu7x:2x2x1
jax: 0.10.0
libtpu: 0.0.40
codegen_flags: <defaults>
</compile_context>

<pallas_src>
import math

import jax
import jax.numpy as jnp
from jax.experimental import pallas as pl
from jax.experimental.pallas import tpu as pltpu

# ---- model hyper-parameters (small, consistent with the module) ----
BATCH = 2
SEQ = 8
D_MODEL = 32
HEADS = 4
D_HID = 32
D_K = D_HID // HEADS


def _make_mha_kernel(bs, seq):
    def mha_kernel(x_ref, mask_ref, wqkv_ref, bqkv_ref, wff_ref, bff_ref, o_ref):
        # x_ref:    (bs*seq, 3*D_MODEL)  rows ordered (b, s); lanes = [q | k | v]
        # mask_ref: (bs, seq)            1.0 = keep, 0.0 = masked
        # wqkv_ref: (3*D_MODEL, 3*D_HID) block_diag(Wq/sqrt(dk), Wk, Wv)
        # bqkv_ref: (1, 3*D_HID)         [bq/sqrt(dk) | bk | bv]
        # wff_ref:  (D_HID, D_HID); bff_ref: (1, D_HID)
        # o_ref:    (bs*seq, D_HID)

        # Fused, pre-scaled Q/K/V projection: one MXU matmul for all rows.
        qkv = jnp.dot(x_ref[...], wqkv_ref[...],
                      preferred_element_type=jnp.float32) + bqkv_ref[...]

        wff = wff_ref[...]
        bff = bff_ref[...]

        for b in range(bs):                              # unrolled at trace time
            r0 = b * seq
            Qb = qkv[r0:r0 + seq, 0:D_HID]               # (seq, D_HID), pre-scaled
            Kb = qkv[r0:r0 + seq, D_HID:2 * D_HID]
            Vb = qkv[r0:r0 + seq, 2 * D_HID:3 * D_HID]

            m = mask_ref[b]                              # (seq,)
            # additive mask bias, hoisted out of the head loop
            neg_bias = jnp.where(m[None, :] == 0.0, -1e30, 0.0)   # (1, seq)

            acc = jnp.zeros((seq, D_HID), jnp.float32)
            for h in range(HEADS):                       # unrolled at trace time
                lo = h * D_K
                Qh = Qb[:, lo:lo + D_K]                  # (seq, D_K)
                Kh = Kb[:, lo:lo + D_K]
                Vh = Vb[:, lo:lo + D_K]

                s = jnp.dot(Qh, Kh.T, preferred_element_type=jnp.float32) + neg_bias
                s = s - jnp.max(s, axis=-1, keepdims=True)
                e = jnp.exp(s)
                p = e * pl.reciprocal(jnp.sum(e, axis=-1, keepdims=True), approx=True)
                head = jnp.dot(p, Vh, preferred_element_type=jnp.float32)  # (seq, D_K)
                # concat(heads) @ Wff == sum_h head_h @ Wff[h*D_K:(h+1)*D_K, :]
                acc = acc + jnp.dot(head, wff[lo:lo + D_K, :],
                                    preferred_element_type=jnp.float32)

            out = (acc + bff) * m[:, None]               # output masking
            o_ref[r0:r0 + seq, :] = out.astype(o_ref.dtype)

    return mha_kernel


def fuse_params(params):
    """Host-side (once): fold 1/sqrt(d_k) into Wq/bq, build block-diag QKV weight."""
    wq, bq, wk, bk, wv, bv, wff, bff = params
    scale = 1.0 / math.sqrt(D_K)
    wqkv = jnp.zeros((3 * D_MODEL, 3 * D_HID), jnp.float32)
    wqkv = wqkv.at[0:D_MODEL, 0:D_HID].set(wq * scale)
    wqkv = wqkv.at[D_MODEL:2 * D_MODEL, D_HID:2 * D_HID].set(wk)
    wqkv = wqkv.at[2 * D_MODEL:, 2 * D_HID:].set(wv)
    bqkv = jnp.concatenate([bq * scale, bk, bv], axis=-1)   # (1, 3*D_HID)
    return wqkv, bqkv, wff, bff


def multihead_attention_layer(q, k, v, mask, fused_params):
    wqkv, bqkv, wff, bff = fused_params
    bs, seq, _ = q.shape
    # Lane-concat [q|k|v] so the fused projection is a single matmul (layout plumbing).
    x = jnp.concatenate([q, k, v], axis=-1).reshape(bs * seq, 3 * D_MODEL)

    vmem = lambda: pl.BlockSpec(memory_space=pltpu.MemorySpace.VMEM)
    out = pl.pallas_call(
        _make_mha_kernel(bs, seq),
        out_shape=jax.ShapeDtypeStruct((bs * seq, D_HID), jnp.float32),
        in_specs=[vmem() for _ in range(6)],
        out_specs=vmem(),
    )(x, mask, wqkv, bqkv, wff, bff)
    return out.reshape(bs, seq, D_HID)


def reference_jax(q, k, v, mask, params):
    wq, bq, wk, bk, wv, bv, wff, bff = params
    bs = q.shape[0]
    Q = (q @ wq + bq).reshape(bs, SEQ, HEADS, D_K).transpose(0, 2, 1, 3)
    K = (k @ wk + bk).reshape(bs, SEQ, HEADS, D_K).transpose(0, 2, 1, 3)
    V = (v @ wv + bv).reshape(bs, SEQ, HEADS, D_K).transpose(0, 2, 1, 3)
    s = jnp.einsum("bhqd,bhkd->bhqk", Q, K) / math.sqrt(D_K)
    s = jnp.where(mask[:, None, None, :] == 0.0, -jnp.inf, s)
    p = jax.nn.softmax(s, axis=-1)
    wv_out = jnp.einsum("bhqk,bhkd->bhqd", p, V)
    concat = wv_out.transpose(0, 2, 1, 3).reshape(bs, SEQ, D_HID)
    out = concat @ wff + bff
    return out * mask[:, :, None]


if __name__ == "__main__":
    key = jax.random.PRNGKey(0)
    ks = jax.random.split(key, 12)

    q = jax.random.normal(ks[0], (BATCH, SEQ, D_MODEL), jnp.float32)
    k = jax.random.normal(ks[1], (BATCH, SEQ, D_MODEL), jnp.float32)
    v = jax.random.normal(ks[2], (BATCH, SEQ, D_MODEL), jnp.float32)

    # mask: 1.0 = valid token, 0.0 = padded (last position of batch 1 padded).
    mask = jnp.ones((BATCH, SEQ), jnp.float32).at[1, SEQ - 1].set(0.0)

    def linear_params(kw, kb, d_in, d_out):
        # nn.Linear-like uniform init; stored as (in, out) + (1, out).
        bound = 1.0 / math.sqrt(d_in)
        w = jax.random.uniform(kw, (d_in, d_out), jnp.float32, -bound, bound)
        b = jax.random.uniform(kb, (1, d_out), jnp.float32, -bound, bound)
        return w, b

    wq, bq = linear_params(ks[3], ks[4], D_MODEL, D_HID)
    wk, bk = linear_params(ks[5], ks[6], D_MODEL, D_HID)
    wv, bv = linear_params(ks[7], ks[8], D_MODEL, D_HID)
    wff, bff = linear_params(ks[9], ks[10], D_HID, D_HID)
    params = (wq, bq, wk, bk, wv, bv, wff, bff)
    fused = fuse_params(params)

    out = multihead_attention_layer(q, k, v, mask, fused)
    out = jax.block_until_ready(out)

    ref = reference_jax(q, k, v, mask, params)
    assert out.shape == (BATCH, SEQ, D_HID)
    # tolerance loosened slightly for pl.reciprocal(approx=True) in the softmax
    assert jnp.allclose(out, ref, atol=3e-3, rtol=3e-3), "mismatch vs JAX reference"

    print("KERNEL_OK")
</pallas_src>

<mosaic_0001>
module attributes {stable_mosaic.version = 11 : i64} {
  func.func @mha_kernel(%arg0: memref<16x96xf32, #tpu.memory_space<vmem>>, %arg1: memref<2x8xf32, #tpu.memory_space<vmem>>, %arg2: memref<96x96xf32, #tpu.memory_space<vmem>>, %arg3: memref<1x96xf32, #tpu.memory_space<vmem>>, %arg4: memref<32x32xf32, #tpu.memory_space<vmem>>, %arg5: memref<1x32xf32, #tpu.memory_space<vmem>>, %arg6: memref<16x32xf32, #tpu.memory_space<vmem>>) attributes {dimension_semantics = [], scalar_prefetch = 0 : i64, scratch_operands = 0 : i64, tpu.core_type = #tpu.core_type<tc>} {
    %c0 = arith.constant 0 : index
    %c0_0 = arith.constant 0 : index
    %0 = vector.load %arg0[%c0, %c0_0] : memref<16x96xf32, #tpu.memory_space<vmem>>, vector<16x96xf32>
    %c0_1 = arith.constant 0 : index
    %c0_2 = arith.constant 0 : index
    %1 = vector.load %arg2[%c0_1, %c0_2] : memref<96x96xf32, #tpu.memory_space<vmem>>, vector<96x96xf32>
    %cst = arith.constant dense<0.000000e+00> : vector<16x96xf32>
    %2 = tpu.matmul %0, %1, %cst {dimension_numbers = #tpu.dot_dimension_numbers<[1], [0], [0], [1], [0, 0, 1, 1], [], []>} : vector<16x96xf32>, vector<96x96xf32>, vector<16x96xf32> -> vector<16x96xf32>
    %c0_3 = arith.constant 0 : index
    %c0_4 = arith.constant 0 : index
    %3 = vector.load %arg3[%c0_3, %c0_4] : memref<1x96xf32, #tpu.memory_space<vmem>>, vector<1x96xf32>
    %4 = vector.broadcast %3 : vector<1x96xf32> to vector<16x96xf32>
    %5 = arith.addf %2, %4 : vector<16x96xf32>
    %c0_5 = arith.constant 0 : index
    %c0_6 = arith.constant 0 : index
    %6 = vector.load %arg4[%c0_5, %c0_6] : memref<32x32xf32, #tpu.memory_space<vmem>>, vector<32x32xf32>
    %c0_7 = arith.constant 0 : index
    %c0_8 = arith.constant 0 : index
    %7 = vector.load %arg5[%c0_7, %c0_8] : memref<1x32xf32, #tpu.memory_space<vmem>>, vector<1x32xf32>
    %8 = vector.extract_strided_slice %5 {offsets = [0, 0], sizes = [8, 32], strides = [1, 1]} : vector<16x96xf32> to vector<8x32xf32>
    %9 = vector.extract_strided_slice %5 {offsets = [0, 32], sizes = [8, 32], strides = [1, 1]} : vector<16x96xf32> to vector<8x32xf32>
    %10 = vector.extract_strided_slice %5 {offsets = [0, 64], sizes = [8, 32], strides = [1, 1]} : vector<16x96xf32> to vector<8x32xf32>
    %c0_9 = arith.constant 0 : index
    %c0_10 = arith.constant 0 : index
    %11 = vector.load %arg1[%c0_9, %c0_10] : memref<2x8xf32, #tpu.memory_space<vmem>>, vector<1x8xf32>
    %12 = vector.shape_cast %11 : vector<1x8xf32> to vector<8xf32>
    %13 = vector.shape_cast %12 : vector<8xf32> to vector<1x8xf32>
    %cst_11 = arith.constant 0.000000e+00 : f32
    %14 = vector.broadcast %cst_11 : f32 to vector<1x8xf32>
    %15 = arith.cmpf oeq, %13, %14 : vector<1x8xf32>
    %cst_12 = arith.constant -1.000000e+30 : f32
    %cst_13 = arith.constant 0.000000e+00 : f32
    %16 = vector.broadcast %cst_12 : f32 to vector<1x8xf32>
    %17 = vector.broadcast %cst_13 : f32 to vector<1x8xf32>
    %18 = arith.select %15, %16, %17 : vector<1x8xi1>, vector<1x8xf32>
    %cst_14 = arith.constant 0.000000e+00 : f32
    %19 = vector.broadcast %cst_14 : f32 to vector<8x32xf32>
    %20 = vector.extract_strided_slice %8 {offsets = [0, 0], sizes = [8, 8], strides = [1, 1]} : vector<8x32xf32> to vector<8x8xf32>
    %21 = vector.extract_strided_slice %9 {offsets = [0, 0], sizes = [8, 8], strides = [1, 1]} : vector<8x32xf32> to vector<8x8xf32>
    %22 = vector.extract_strided_slice %10 {offsets = [0, 0], sizes = [8, 8], strides = [1, 1]} : vector<8x32xf32> to vector<8x8xf32>
    %23 = tpu.transpose %21, [1, 0] : vector<8x8xf32> -> vector<8x8xf32>
    %cst_15 = arith.constant dense<0.000000e+00> : vector<8x8xf32>
    %24 = tpu.matmul %20, %23, %cst_15 {dimension_numbers = #tpu.dot_dimension_numbers<[1], [0], [0], [1], [0, 0, 1, 1], [], []>} : vector<8x8xf32>, vector<8x8xf32>, vector<8x8xf32> -> vector<8x8xf32>
    %25 = vector.broadcast %18 : vector<1x8xf32> to vector<8x8xf32>
    %26 = arith.addf %24, %25 : vector<8x8xf32>
    %cst_16 = arith.constant dense<0xFF800000> : vector<8xf32>
    %27 = vector.multi_reduction <maximumf>, %26, %cst_16 [1] : vector<8x8xf32> to vector<8xf32>
    %28 = vector.shape_cast %27 : vector<8xf32> to vector<8x1xf32>
    %29 = vector.broadcast %28 : vector<8x1xf32> to vector<8x8xf32>
    %30 = arith.subf %26, %29 : vector<8x8xf32>
    %31 = math.exp %30 : vector<8x8xf32>
    %cst_17 = arith.constant dense<0.000000e+00> : vector<8xf32>
    %32 = vector.multi_reduction <add>, %31, %cst_17 [1] : vector<8x8xf32> to vector<8xf32>
    %33 = vector.shape_cast %32 : vector<8xf32> to vector<8x1xf32>
    %34 = tpu.reciprocal %33 {approx = true} : vector<8x1xf32> -> vector<8x1xf32>
    %35 = vector.broadcast %34 : vector<8x1xf32> to vector<8x8xf32>
    %36 = arith.mulf %31, %35 : vector<8x8xf32>
    %cst_18 = arith.constant dense<0.000000e+00> : vector<8x8xf32>
    %37 = tpu.matmul %36, %22, %cst_18 {dimension_numbers = #tpu.dot_dimension_numbers<[1], [0], [0], [1], [0, 0, 1, 1], [], []>} : vector<8x8xf32>, vector<8x8xf32>, vector<8x8xf32> -> vector<8x8xf32>
    %38 = vector.extract_strided_slice %6 {offsets = [0, 0], sizes = [8, 32], strides = [1, 1]} : vector<32x32xf32> to vector<8x32xf32>
    %cst_19 = arith.constant dense<0.000000e+00> : vector<8x32xf32>
    %39 = tpu.matmul %37, %38, %cst_19 {dimension_numbers = #tpu.dot_dimension_numbers<[1], [0], [0], [1], [0, 0, 1, 1], [], []>} : vector<8x8xf32>, vector<8x32xf32>, vector<8x32xf32> -> vector<8x32xf32>
    %40 = arith.addf %19, %39 : vector<8x32xf32>
    %41 = vector.extract_strided_slice %8 {offsets = [0, 8], sizes = [8, 8], strides = [1, 1]} : vector<8x32xf32> to vector<8x8xf32>
    %42 = vector.extract_strided_slice %9 {offsets = [0, 8], sizes = [8, 8], strides = [1, 1]} : vector<8x32xf32> to vector<8x8xf32>
    %43 = vector.extract_strided_slice %10 {offsets = [0, 8], sizes = [8, 8], strides = [1, 1]} : vector<8x32xf32> to vector<8x8xf32>
    %44 = tpu.transpose %42, [1, 0] : vector<8x8xf32> -> vector<8x8xf32>
    %cst_20 = arith.constant dense<0.000000e+00> : vector<8x8xf32>
    %45 = tpu.matmul %41, %44, %cst_20 {dimension_numbers = #tpu.dot_dimension_numbers<[1], [0], [0], [1], [0, 0, 1, 1], [], []>} : vector<8x8xf32>, vector<8x8xf32>, vector<8x8xf32> -> vector<8x8xf32>
    %46 = vector.broadcast %18 : vector<1x8xf32> to vector<8x8xf32>
    %47 = arith.addf %45, %46 : vector<8x8xf32>
    %cst_21 = arith.constant dense<0xFF800000> : vector<8xf32>
    %48 = vector.multi_reduction <maximumf>, %47, %cst_21 [1] : vector<8x8xf32> to vector<8xf32>
    %49 = vector.shape_cast %48 : vector<8xf32> to vector<8x1xf32>
    %50 = vector.broadcast %49 : vector<8x1xf32> to vector<8x8xf32>
    %51 = arith.subf %47, %50 : vector<8x8xf32>
    %52 = math.exp %51 : vector<8x8xf32>
    %cst_22 = arith.constant dense<0.000000e+00> : vector<8xf32>
    %53 = vector.multi_reduction <add>, %52, %cst_22 [1] : vector<8x8xf32> to vector<8xf32>
    %54 = vector.shape_cast %53 : vector<8xf32> to vector<8x1xf32>
    %55 = tpu.reciprocal %54 {approx = true} : vector<8x1xf32> -> vector<8x1xf32>
    %56 = vector.broadcast %55 : vector<8x1xf32> to vector<8x8xf32>
    %57 = arith.mulf %52, %56 : vector<8x8xf32>
    %cst_23 = arith.constant dense<0.000000e+00> : vector<8x8xf32>
    %58 = tpu.matmul %57, %43, %cst_23 {dimension_numbers = #tpu.dot_dimension_numbers<[1], [0], [0], [1], [0, 0, 1, 1], [], []>} : vector<8x8xf32>, vector<8x8xf32>, vector<8x8xf32> -> vector<8x8xf32>
    %59 = vector.extract_strided_slice %6 {offsets = [8, 0], sizes = [8, 32], strides = [1, 1]} : vector<32x32xf32> to vector<8x32xf32>
    %cst_24 = arith.constant dense<0.000000e+00> : vector<8x32xf32>
    %60 = tpu.matmul %58, %59, %cst_24 {dimension_numbers = #tpu.dot_dimension_numbers<[1], [0], [0], [1], [0, 0, 1, 1], [], []>} : vector<8x8xf32>, vector<8x32xf32>, vector<8x32xf32> -> vector<8x32xf32>
    %61 = arith.addf %40, %60 : vector<8x32xf32>
    %62 = vector.extract_strided_slice %8 {offsets = [0, 16], sizes = [8, 8], strides = [1, 1]} : vector<8x32xf32> to vector<8x8xf32>
    %63 = vector.extract_strided_slice %9 {offsets = [0, 16], sizes = [8, 8], strides = [1, 1]} : vector<8x32xf32> to vector<8x8xf32>
    %64 = vector.extract_strided_slice %10 {offsets = [0, 16], sizes = [8, 8], strides = [1, 1]} : vector<8x32xf32> to vector<8x8xf32>
    %65 = tpu.transpose %63, [1, 0] : vector<8x8xf32> -> vector<8x8xf32>
    %cst_25 = arith.constant dense<0.000000e+00> : vector<8x8xf32>
    %66 = tpu.matmul %62, %65, %cst_25 {dimension_numbers = #tpu.dot_dimension_numbers<[1], [0], [0], [1], [0, 0, 1, 1], [], []>} : vector<8x8xf32>, vector<8x8xf32>, vector<8x8xf32> -> vector<8x8xf32>
    %67 = vector.broadcast %18 : vector<1x8xf32> to vector<8x8xf32>
    %68 = arith.addf %66, %67 : vector<8x8xf32>
    %cst_26 = arith.constant dense<0xFF800000> : vector<8xf32>
    %69 = vector.multi_reduction <maximumf>, %68, %cst_26 [1] : vector<8x8xf32> to vector<8xf32>
    %70 = vector.shape_cast %69 : vector<8xf32> to vector<8x1xf32>
    %71 = vector.broadcast %70 : vector<8x1xf32> to vector<8x8xf32>
    %72 = arith.subf %68, %71 : vector<8x8xf32>
    %73 = math.exp %72 : vector<8x8xf32>
    %cst_27 = arith.constant dense<0.000000e+00> : vector<8xf32>
    %74 = vector.multi_reduction <add>, %73, %cst_27 [1] : vector<8x8xf32> to vector<8xf32>
    %75 = vector.shape_cast %74 : vector<8xf32> to vector<8x1xf32>
    %76 = tpu.reciprocal %75 {approx = true} : vector<8x1xf32> -> vector<8x1xf32>
    %77 = vector.broadcast %76 : vector<8x1xf32> to vector<8x8xf32>
    %78 = arith.mulf %73, %77 : vector<8x8xf32>
    %cst_28 = arith.constant dense<0.000000e+00> : vector<8x8xf32>
    %79 = tpu.matmul %78, %64, %cst_28 {dimension_numbers = #tpu.dot_dimension_numbers<[1], [0], [0], [1], [0, 0, 1, 1], [], []>} : vector<8x8xf32>, vector<8x8xf32>, vector<8x8xf32> -> vector<8x8xf32>
    %80 = vector.extract_strided_slice %6 {offsets = [16, 0], sizes = [8, 32], strides = [1, 1]} : vector<32x32xf32> to vector<8x32xf32>
    %cst_29 = arith.constant dense<0.000000e+00> : vector<8x32xf32>
    %81 = tpu.matmul %79, %80, %cst_29 {dimension_numbers = #tpu.dot_dimension_numbers<[1], [0], [0], [1], [0, 0, 1, 1], [], []>} : vector<8x8xf32>, vector<8x32xf32>, vector<8x32xf32> -> vector<8x32xf32>
    %82 = arith.addf %61, %81 : vector<8x32xf32>
    %83 = vector.extract_strided_slice %8 {offsets = [0, 24], sizes = [8, 8], strides = [1, 1]} : vector<8x32xf32> to vector<8x8xf32>
    %84 = vector.extract_strided_slice %9 {offsets = [0, 24], sizes = [8, 8], strides = [1, 1]} : vector<8x32xf32> to vector<8x8xf32>
    %85 = vector.extract_strided_slice %10 {offsets = [0, 24], sizes = [8, 8], strides = [1, 1]} : vector<8x32xf32> to vector<8x8xf32>
    %86 = tpu.transpose %84, [1, 0] : vector<8x8xf32> -> vector<8x8xf32>
    %cst_30 = arith.constant dense<0.000000e+00> : vector<8x8xf32>
    %87 = tpu.matmul %83, %86, %cst_30 {dimension_numbers = #tpu.dot_dimension_numbers<[1], [0], [0], [1], [0, 0, 1, 1], [], []>} : vector<8x8xf32>, vector<8x8xf32>, vector<8x8xf32> -> vector<8x8xf32>
    %88 = vector.broadcast %18 : vector<1x8xf32> to vector<8x8xf32>
    %89 = arith.addf %87, %88 : vector<8x8xf32>
    %cst_31 = arith.constant dense<0xFF800000> : vector<8xf32>
    %90 = vector.multi_reduction <maximumf>, %89, %cst_31 [1] : vector<8x8xf32> to vector<8xf32>
    %91 = vector.shape_cast %90 : vector<8xf32> to vector<8x1xf32>
    %92 = vector.broadcast %91 : vector<8x1xf32> to vector<8x8xf32>
    %93 = arith.subf %89, %92 : vector<8x8xf32>
    %94 = math.exp %93 : vector<8x8xf32>
    %cst_32 = arith.constant dense<0.000000e+00> : vector<8xf32>
    %95 = vector.multi_reduction <add>, %94, %cst_32 [1] : vector<8x8xf32> to vector<8xf32>
    %96 = vector.shape_cast %95 : vector<8xf32> to vector<8x1xf32>
    %97 = tpu.reciprocal %96 {approx = true} : vector<8x1xf32> -> vector<8x1xf32>
    %98 = vector.broadcast %97 : vector<8x1xf32> to vector<8x8xf32>
    %99 = arith.mulf %94, %98 : vector<8x8xf32>
    %cst_33 = arith.constant dense<0.000000e+00> : vector<8x8xf32>
    %100 = tpu.matmul %99, %85, %cst_33 {dimension_numbers = #tpu.dot_dimension_numbers<[1], [0], [0], [1], [0, 0, 1, 1], [], []>} : vector<8x8xf32>, vector<8x8xf32>, vector<8x8xf32> -> vector<8x8xf32>
    %101 = vector.extract_strided_slice %6 {offsets = [24, 0], sizes = [8, 32], strides = [1, 1]} : vector<32x32xf32> to vector<8x32xf32>
    %cst_34 = arith.constant dense<0.000000e+00> : vector<8x32xf32>
    %102 = tpu.matmul %100, %101, %cst_34 {dimension_numbers = #tpu.dot_dimension_numbers<[1], [0], [0], [1], [0, 0, 1, 1], [], []>} : vector<8x8xf32>, vector<8x32xf32>, vector<8x32xf32> -> vector<8x32xf32>
    %103 = arith.addf %82, %102 : vector<8x32xf32>
    %104 = vector.broadcast %7 : vector<1x32xf32> to vector<8x32xf32>
    %105 = arith.addf %103, %104 : vector<8x32xf32>
    %106 = vector.shape_cast %12 : vector<8xf32> to vector<8x1xf32>
    %107 = vector.broadcast %106 : vector<8x1xf32> to vector<8x32xf32>
    %108 = arith.mulf %105, %107 : vector<8x32xf32>
    %c0_35 = arith.constant 0 : index
    %c0_36 = arith.constant 0 : index
    %109 = vector.load %arg6[%c0_35, %c0_36] : memref<16x32xf32, #tpu.memory_space<vmem>>, vector<8x32xf32>
    tpu.vector_store %arg6[%c0_35, %c0_36], %108 {strides = array<i32>} : memref<16x32xf32, #tpu.memory_space<vmem>>, vector<8x32xf32>,
    %110 = vector.extract_strided_slice %5 {offsets = [8, 0], sizes = [8, 32], strides = [1, 1]} : vector<16x96xf32> to vector<8x32xf32>
    %111 = vector.extract_strided_slice %5 {offsets = [8, 32], sizes = [8, 32], strides = [1, 1]} : vector<16x96xf32> to vector<8x32xf32>
    %112 = vector.extract_strided_slice %5 {offsets = [8, 64], sizes = [8, 32], strides = [1, 1]} : vector<16x96xf32> to vector<8x32xf32>
    %c1 = arith.constant 1 : index
    %c0_37 = arith.constant 0 : index
    %113 = vector.load %arg1[%c1, %c0_37] : memref<2x8xf32, #tpu.memory_space<vmem>>, vector<1x8xf32>
    %114 = vector.shape_cast %113 : vector<1x8xf32> to vector<8xf32>
    %115 = vector.shape_cast %114 : vector<8xf32> to vector<1x8xf32>
    %cst_38 = arith.constant 0.000000e+00 : f32
    %116 = vector.broadcast %cst_38 : f32 to vector<1x8xf32>
    %117 = arith.cmpf oeq, %115, %116 : vector<1x8xf32>
    %cst_39 = arith.constant -1.000000e+30 : f32
    %cst_40 = arith.constant 0.000000e+00 : f32
    %118 = vector.broadcast %cst_39 : f32 to vector<1x8xf32>
    %119 = vector.broadcast %cst_40 : f32 to vector<1x8xf32>
    %120 = arith.select %117, %118, %119 : vector<1x8xi1>, vector<1x8xf32>
    %cst_41 = arith.constant 0.000000e+00 : f32
    %121 = vector.broadcast %cst_41 : f32 to vector<8x32xf32>
    %122 = vector.extract_strided_slice %110 {offsets = [0, 0], sizes = [8, 8], strides = [1, 1]} : vector<8x32xf32> to vector<8x8xf32>
    %123 = vector.extract_strided_slice %111 {offsets = [0, 0], sizes = [8, 8], strides = [1, 1]} : vector<8x32xf32> to vector<8x8xf32>
    %124 = vector.extract_strided_slice %112 {offsets = [0, 0], sizes = [8, 8], strides = [1, 1]} : vector<8x32xf32> to vector<8x8xf32>
    %125 = tpu.transpose %123, [1, 0] : vector<8x8xf32> -> vector<8x8xf32>
    %cst_42 = arith.constant dense<0.000000e+00> : vector<8x8xf32>
    %126 = tpu.matmul %122, %125, %cst_42 {dimension_numbers = #tpu.dot_dimension_numbers<[1], [0], [0], [1], [0, 0, 1, 1], [], []>} : vector<8x8xf32>, vector<8x8xf32>, vector<8x8xf32> -> vector<8x8xf32>
    %127 = vector.broadcast %120 : vector<1x8xf32> to vector<8x8xf32>
    %128 = arith.addf %126, %127 : vector<8x8xf32>
    %cst_43 = arith.constant dense<0xFF800000> : vector<8xf32>
    %129 = vector.multi_reduction <maximumf>, %128, %cst_43 [1] : vector<8x8xf32> to vector<8xf32>
    %130 = vector.shape_cast %129 : vector<8xf32> to vector<8x1xf32>
    %131 = vector.broadcast %130 : vector<8x1xf32> to vector<8x8xf32>
    %132 = arith.subf %128, %131 : vector<8x8xf32>
    %133 = math.exp %132 : vector<8x8xf32>
    %cst_44 = arith.constant dense<0.000000e+00> : vector<8xf32>
    %134 = vector.multi_reduction <add>, %133, %cst_44 [1] : vector<8x8xf32> to vector<8xf32>
    %135 = vector.shape_cast %134 : vector<8xf32> to vector<8x1xf32>
    %136 = tpu.reciprocal %135 {approx = true} : vector<8x1xf32> -> vector<8x1xf32>
    %137 = vector.broadcast %136 : vector<8x1xf32> to vector<8x8xf32>
    %138 = arith.mulf %133, %137 : vector<8x8xf32>
    %cst_45 = arith.constant dense<0.000000e+00> : vector<8x8xf32>
    %139 = tpu.matmul %138, %124, %cst_45 {dimension_numbers = #tpu.dot_dimension_numbers<[1], [0], [0], [1], [0, 0, 1, 1], [], []>} : vector<8x8xf32>, vector<8x8xf32>, vector<8x8xf32> -> vector<8x8xf32>
    %140 = vector.extract_strided_slice %6 {offsets = [0, 0], sizes = [8, 32], strides = [1, 1]} : vector<32x32xf32> to vector<8x32xf32>
    %cst_46 = arith.constant dense<0.000000e+00> : vector<8x32xf32>
    %141 = tpu.matmul %139, %140, %cst_46 {dimension_numbers = #tpu.dot_dimension_numbers<[1], [0], [0], [1], [0, 0, 1, 1], [], []>} : vector<8x8xf32>, vector<8x32xf32>, vector<8x32xf32> -> vector<8x32xf32>
    %142 = arith.addf %121, %141 : vector<8x32xf32>
    %143 = vector.extract_strided_slice %110 {offsets = [0, 8], sizes = [8, 8], strides = [1, 1]} : vector<8x32xf32> to vector<8x8xf32>
    %144 = vector.extract_strided_slice %111 {offsets = [0, 8], sizes = [8, 8], strides = [1, 1]} : vector<8x32xf32> to vector<8x8xf32>
    %145 = vector.extract_strided_slice %112 {offsets = [0, 8], sizes = [8, 8], strides = [1, 1]} : vector<8x32xf32> to vector<8x8xf32>
    %146 = tpu.transpose %144, [1, 0] : vector<8x8xf32> -> vector<8x8xf32>
    %cst_47 = arith.constant dense<0.000000e+00> : vector<8x8xf32>
    %147 = tpu.matmul %143, %146, %cst_47 {dimension_numbers = #tpu.dot_dimension_numbers<[1], [0], [0], [1], [0, 0, 1, 1], [], []>} : vector<8x8xf32>, vector<8x8xf32>, vector<8x8xf32> -> vector<8x8xf32>
    %148 = vector.broadcast %120 : vector<1x8xf32> to vector<8x8xf32>
    %149 = arith.addf %147, %148 : vector<8x8xf32>
    %cst_48 = arith.constant dense<0xFF800000> : vector<8xf32>
    %150 = vector.multi_reduction <maximumf>, %149, %cst_48 [1] : vector<8x8xf32> to vector<8xf32>
    %151 = vector.shape_cast %150 : vector<8xf32> to vector<8x1xf32>
    %152 = vector.broadcast %151 : vector<8x1xf32> to vector<8x8xf32>
    %153 = arith.subf %149, %152 : vector<8x8xf32>
    %154 = math.exp %153 : vector<8x8xf32>
    %cst_49 = arith.constant dense<0.000000e+00> : vector<8xf32>
    %155 = vector.multi_reduction <add>, %154, %cst_49 [1] : vector<8x8xf32> to vector<8xf32>
    %156 = vector.shape_cast %155 : vector<8xf32> to vector<8x1xf32>
    %157 = tpu.reciprocal %156 {approx = true} : vector<8x1xf32> -> vector<8x1xf32>
    %158 = vector.broadcast %157 : vector<8x1xf32> to vector<8x8xf32>
    %159 = arith.mulf %154, %158 : vector<8x8xf32>
    %cst_50 = arith.constant dense<0.000000e+00> : vector<8x8xf32>
    %160 = tpu.matmul %159, %145, %cst_50 {dimension_numbers = #tpu.dot_dimension_numbers<[1], [0], [0], [1], [0, 0, 1, 1], [], []>} : vector<8x8xf32>, vector<8x8xf32>, vector<8x8xf32> -> vector<8x8xf32>
    %161 = vector.extract_strided_slice %6 {offsets = [8, 0], sizes = [8, 32], strides = [1, 1]} : vector<32x32xf32> to vector<8x32xf32>
    %cst_51 = arith.constant dense<0.000000e+00> : vector<8x32xf32>
    %162 = tpu.matmul %160, %161, %cst_51 {dimension_numbers = #tpu.dot_dimension_numbers<[1], [0], [0], [1], [0, 0, 1, 1], [], []>} : vector<8x8xf32>, vector<8x32xf32>, vector<8x32xf32> -> vector<8x32xf32>
    %163 = arith.addf %142, %162 : vector<8x32xf32>
    %164 = vector.extract_strided_slice %110 {offsets = [0, 16], sizes = [8, 8], strides = [1, 1]} : vector<8x32xf32> to vector<8x8xf32>
    %165 = vector.extract_strided_slice %111 {offsets = [0, 16], sizes = [8, 8], strides = [1, 1]} : vector<8x32xf32> to vector<8x8xf32>
    %166 = vector.extract_strided_slice %112 {offsets = [0, 16], sizes = [8, 8], strides = [1, 1]} : vector<8x32xf32> to vector<8x8xf32>
    %167 = tpu.transpose %165, [1, 0] : vector<8x8xf32> -> vector<8x8xf32>
    %cst_52 = arith.constant dense<0.000000e+00> : vector<8x8xf32>
    %168 = tpu.matmul %164, %167, %cst_52 {dimension_numbers = #tpu.dot_dimension_numbers<[1], [0], [0], [1], [0, 0, 1, 1], [], []>} : vector<8x8xf32>, vector<8x8xf32>, vector<8x8xf32> -> vector<8x8xf32>
    %169 = vector.broadcast %120 : vector<1x8xf32> to vector<8x8xf32>
    %170 = arith.addf %168, %169 : vector<8x8xf32>
    %cst_53 = arith.constant dense<0xFF800000> : vector<8xf32>
    %171 = vector.multi_reduction <maximumf>, %170, %cst_53 [1] : vector<8x8xf32> to vector<8xf32>
    %172 = vector.shape_cast %171 : vector<8xf32> to vector<8x1xf32>
    %173 = vector.broadcast %172 : vector<8x1xf32> to vector<8x8xf32>
    %174 = arith.subf %170, %173 : vector<8x8xf32>
    %175 = math.exp %174 : vector<8x8xf32>
    %cst_54 = arith.constant dense<0.000000e+00> : vector<8xf32>
    %176 = vector.multi_reduction <add>, %175, %cst_54 [1] : vector<8x8xf32> to vector<8xf32>
    %177 = vector.shape_cast %176 : vector<8xf32> to vector<8x1xf32>
    %178 = tpu.reciprocal %177 {approx = true} : vector<8x1xf32> -> vector<8x1xf32>
    %179 = vector.broadcast %178 : vector<8x1xf32> to vector<8x8xf32>
    %180 = arith.mulf %175, %179 : vector<8x8xf32>
    %cst_55 = arith.constant dense<0.000000e+00> : vector<8x8xf32>
    %181 = tpu.matmul %180, %166, %cst_55 {dimension_numbers = #tpu.dot_dimension_numbers<[1], [0], [0], [1], [0, 0, 1, 1], [], []>} : vector<8x8xf32>, vector<8x8xf32>, vector<8x8xf32> -> vector<8x8xf32>
    %182 = vector.extract_strided_slice %6 {offsets = [16, 0], sizes = [8, 32], strides = [1, 1]} : vector<32x32xf32> to vector<8x32xf32>
    %cst_56 = arith.constant dense<0.000000e+00> : vector<8x32xf32>
    %183 = tpu.matmul %181, %182, %cst_56 {dimension_numbers = #tpu.dot_dimension_numbers<[1], [0], [0], [1], [0, 0, 1, 1], [], []>} : vector<8x8xf32>, vector<8x32xf32>, vector<8x32xf32> -> vector<8x32xf32>
    %184 = arith.addf %163, %183 : vector<8x32xf32>
    %185 = vector.extract_strided_slice %110 {offsets = [0, 24], sizes = [8, 8], strides = [1, 1]} : vector<8x32xf32> to vector<8x8xf32>
    %186 = vector.extract_strided_slice %111 {offsets = [0, 24], sizes = [8, 8], strides = [1, 1]} : vector<8x32xf32> to vector<8x8xf32>
    %187 = vector.extract_strided_slice %112 {offsets = [0, 24], sizes = [8, 8], strides = [1, 1]} : vector<8x32xf32> to vector<8x8xf32>
    %188 = tpu.transpose %186, [1, 0] : vector<8x8xf32> -> vector<8x8xf32>
    %cst_57 = arith.constant dense<0.000000e+00> : vector<8x8xf32>
    %189 = tpu.matmul %185, %188, %cst_57 {dimension_numbers = #tpu.dot_dimension_numbers<[1], [0], [0], [1], [0, 0, 1, 1], [], []>} : vector<8x8xf32>, vector<8x8xf32>, vector<8x8xf32> -> vector<8x8xf32>
    %190 = vector.broadcast %120 : vector<1x8xf32> to vector<8x8xf32>
    %191 = arith.addf %189, %190 : vector<8x8xf32>
    %cst_58 = arith.constant dense<0xFF800000> : vector<8xf32>
    %192 = vector.multi_reduction <maximumf>, %191, %cst_58 [1] : vector<8x8xf32> to vector<8xf32>
    %193 = vector.shape_cast %192 : vector<8xf32> to vector<8x1xf32>
    %194 = vector.broadcast %193 : vector<8x1xf32> to vector<8x8xf32>
    %195 = arith.subf %191, %194 : vector<8x8xf32>
    %196 = math.exp %195 : vector<8x8xf32>
    %cst_59 = arith.constant dense<0.000000e+00> : vector<8xf32>
    %197 = vector.multi_reduction <add>, %196, %cst_59 [1] : vector<8x8xf32> to vector<8xf32>
    %198 = vector.shape_cast %197 : vector<8xf32> to vector<8x1xf32>
    %199 = tpu.reciprocal %198 {approx = true} : vector<8x1xf32> -> vector<8x1xf32>
    %200 = vector.broadcast %199 : vector<8x1xf32> to vector<8x8xf32>
    %201 = arith.mulf %196, %200 : vector<8x8xf32>
    %cst_60 = arith.constant dense<0.000000e+00> : vector<8x8xf32>
    %202 = tpu.matmul %201, %187, %cst_60 {dimension_numbers = #tpu.dot_dimension_numbers<[1], [0], [0], [1], [0, 0, 1, 1], [], []>} : vector<8x8xf32>, vector<8x8xf32>, vector<8x8xf32> -> vector<8x8xf32>
    %203 = vector.extract_strided_slice %6 {offsets = [24, 0], sizes = [8, 32], strides = [1, 1]} : vector<32x32xf32> to vector<8x32xf32>
    %cst_61 = arith.constant dense<0.000000e+00> : vector<8x32xf32>
    %204 = tpu.matmul %202, %203, %cst_61 {dimension_numbers = #tpu.dot_dimension_numbers<[1], [0], [0], [1], [0, 0, 1, 1], [], []>} : vector<8x8xf32>, vector<8x32xf32>, vector<8x32xf32> -> vector<8x32xf32>
    %205 = arith.addf %184, %204 : vector<8x32xf32>
    %206 = vector.broadcast %7 : vector<1x32xf32> to vector<8x32xf32>
    %207 = arith.addf %205, %206 : vector<8x32xf32>
    %208 = vector.shape_cast %114 : vector<8xf32> to vector<8x1xf32>
    %209 = vector.broadcast %208 : vector<8x1xf32> to vector<8x32xf32>
    %210 = arith.mulf %207, %209 : vector<8x32xf32>
    %c8 = arith.constant 8 : index
    %c0_62 = arith.constant 0 : index
    %211 = vector.load %arg6[%c8, %c0_62] : memref<16x32xf32, #tpu.memory_space<vmem>>, vector<8x32xf32>
    tpu.vector_store %arg6[%c8, %c0_62], %210 {strides = array<i32>} : memref<16x32xf32, #tpu.memory_space<vmem>>, vector<8x32xf32>,
    return
  }
}

</mosaic_0001>

<llo_original>
// kernel: tpu_custom_call.1
$region0: #{tpu_custom_call.1}
  #allocation0 [shape = 'u32[]', space=smem, size = 0x4, offset = 0x4, fixed_abs, tag = 'smem constant byte address 0x4 - core index']
  #allocation1 [shape = 'u32[144,128]{1,0:T(1,128)}', space=vmem, size = 0x12000, scoped, tag = 'internal scratch']
  %s0 = inlined_call_operand.hbm [shape: f32[16,96], index: 0, kind: input, shape index: {}]
  %s1 = inlined_call_operand.vmem [shape: f32[2,8], index: 1, kind: input, shape index: {}]
  %s2 = inlined_call_operand.hbm [shape: f32[96,96], index: 2, kind: input, shape index: {}]
  %s3 = inlined_call_operand.vmem [shape: f32[1,96], index: 3, kind: input, shape index: {}]
  %s4 = inlined_call_operand.hbm [shape: f32[32,32], index: 4, kind: input, shape index: {}]
  %s5 = inlined_call_operand.vmem [shape: f32[1,32], index: 5, kind: input, shape index: {}]
  %s6 = inlined_call_operand.hbm [shape: f32[16,32], index: 6, kind: output, shape index: {}]
  %s7 = sld [smem:[#allocation0]]
  $region46: #{tpu_custom_call.1} parent=0
    _
  %s9 = ssub.s32 1, %s7
  %s10 = scalar_select 0, %s9, %s7
  $region1: #{tpu_custom_call.1} parent=0
    #allocation2 [shape = 'u8[8192]{0}', space=vmem, size = 0x2000, scoped, tag = 'input window, operand 0, single buffered']
    #allocation3 [shape = 's32[1]{0}', space=sflag, size = 0x4, scoped, tag = 'scoped memory for tpu_custom_call.1']
    #allocation4 [shape = 's32[1]{0}', space=sflag, size = 0x4, scoped, tag = 'scoped memory for tpu_custom_call.1']
    #allocation5 [shape = 'u8[49152]{0}', space=vmem, size = 0xc000, scoped, tag = 'input window, operand 2, single buffered']
    #allocation6 [shape = 's32[1]{0}', space=sflag, size = 0x4, scoped, tag = 'scoped memory for tpu_custom_call.1']
    #allocation7 [shape = 'u8[16384]{0}', space=vmem, size = 0x4000, scoped, tag = 'input window, operand 4, single buffered']
    #allocation8 [shape = 'u8[8192]{0}', space=vmem, size = 0x2000, scoped, tag = 'output window, operand 0, single buffered']
    %11 = vsyncpa [#allocation3], 0
    %12 = vsyncpa [#allocation6], 0
    %13 = vsyncpa [#allocation4], 0
    // Predicated region
    $region2: #{tpu_custom_call.1} parent=1 // pred_check
      _
    $region3: #{tpu_custom_call.1} parent=1 // pred_check_branch
      %15 = sbr.rel (0) target = $region5
    $region4: #{tpu_custom_call.1} parent=1 // pred_region
      %s17 = ssub.s32 256, 256
      %18 = vsyncadd [#allocation3], %s17
      %s19 = sshll.u32 [#allocation2], 4
      %s20 = int_to_ptr.vmem [resolvable:$true] %s19
      %25 = dma.hbm_to_vmem [thread:$0]  %s0, 256, %s20, [#allocation3], 128, 128, 8
    $region5: #{tpu_custom_call.1} parent=1 // pred_fallthru
      _
    // Predicated region
    $region6: #{tpu_custom_call.1} parent=1 // pred_check
      _
    $region7: #{tpu_custom_call.1} parent=1 // pred_check_branch
      %27 = sbr.rel (0) target = $region9
    $region8: #{tpu_custom_call.1} parent=1 // pred_region
      _
    $region9: #{tpu_custom_call.1} parent=1 // pred_fallthru
      _
    // Predicated region
    $region10: #{tpu_custom_call.1} parent=1 // pred_check
      _
    $region11: #{tpu_custom_call.1} parent=1 // pred_check_branch
      %29 = sbr.rel (0) target = $region13
    $region12: #{tpu_custom_call.1} parent=1 // pred_region
      %s31 = ssub.s32 1536, 1536
      %32 = vsyncadd [#allocation6], %s31
      %s33 = sshll.u32 [#allocation5], 4
      %s34 = int_to_ptr.vmem [resolvable:$true] %s33
      %39 = dma.hbm_to_vmem [thread:$0]  %s2, 1536, %s34, [#allocation6], 128, 128, 8
    $region13: #{tpu_custom_call.1} parent=1 // pred_fallthru
      _
    // Predicated region
    $region14: #{tpu_custom_call.1} parent=1 // pred_check
      _
    $region15: #{tpu_custom_call.1} parent=1 // pred_check_branch
      %41 = sbr.rel (0) target = $region17
    $region16: #{tpu_custom_call.1} parent=1 // pred_region
      _
    $region17: #{tpu_custom_call.1} parent=1 // pred_fallthru
      _
    // Predicated region
    $region18: #{tpu_custom_call.1} parent=1 // pred_check
      _
    $region19: #{tpu_custom_call.1} parent=1 // pred_check_branch
      %43 = sbr.rel (0) target = $region21
    $region20: #{tpu_custom_call.1} parent=1 // pred_region
      %s45 = ssub.s32 512, 512
      %46 = vsyncadd [#allocation6], %s45
      %s47 = sshll.u32 [#allocation7], 4
      %s48 = int_to_ptr.vmem [resolvable:$true] %s47
      %53 = dma.hbm_to_vmem [thread:$0]  %s4, 512, %s48, [#allocation6], 128, 128, 8
    $region21: #{tpu_custom_call.1} parent=1 // pred_fallthru
      _
    // Predicated region
    $region22: #{tpu_custom_call.1} parent=1 // pred_check
      _
    $region23: #{tpu_custom_call.1} parent=1 // pred_check_branch
      %55 = sbr.rel (0) target = $region25
    $region24: #{tpu_custom_call.1} parent=1 // pred_region
      _
    $region25: #{tpu_custom_call.1} parent=1 // pred_fallthru
      _
    // Predicated region
    $region26: #{tpu_custom_call.1} parent=1 // pred_check
      _
    $region27: #{tpu_custom_call.1} parent=1 // pred_check_branch
      %57 = sbr.rel (0) target = $region29
    $region28: #{tpu_custom_call.1} parent=1 // pred_region
      %58 = dma.done [#allocation3], 256
    $region29: #{tpu_custom_call.1} parent=1 // pred_fallthru
      _
    // Predicated region
    $region30: #{tpu_custom_call.1} parent=1 // pred_check
      _
    $region31: #{tpu_custom_call.1} parent=1 // pred_check_branch
      %60 = sbr.rel (0) target = $region33
    $region32: #{tpu_custom_call.1} parent=1 // pred_region
      %61 = dma.done [#allocation6], 1536
    $region33: #{tpu_custom_call.1} parent=1 // pred_fallthru
      _
    // Predicated region
    $region34: #{tpu_custom_call.1} parent=1 // pred_check
      _
    $region35: #{tpu_custom_call.1} parent=1 // pred_check_branch
      %63 = sbr.rel (0) target = $region37
    $region36: #{tpu_custom_call.1} parent=1 // pred_region
      %64 = dma.done [#allocation6], 512
    $region37: #{tpu_custom_call.1} parent=1 // pred_fallthru
      _
    %v65 = vld [vmem:[#allocation2] sm:$0xff]
    %v66 = vld [vmem:[#allocation2 + $0x8] sm:$0xff]
    %v67 = vld [vmem:[#allocation5] sm:$0xff]
    %v68 = vld [vmem:[#allocation5 + $0x8] sm:$0xff]
    %v69 = vld [vmem:[#allocation5 + $0x10] sm:$0xff]
    %v70 = vld [vmem:[#allocation5 + $0x18] sm:$0xff]
    %v71 = vld [vmem:[#allocation5 + $0x20] sm:$0xff]
    %v72 = vld [vmem:[#allocation5 + $0x28] sm:$0xff]
    %v73 = vld [vmem:[#allocation5 + $0x30] sm:$0xff]
    %v74 = vld [vmem:[#allocation5 + $0x38] sm:$0xff]
    %v75 = vld [vmem:[#allocation5 + $0x40] sm:$0xff]
    %v76 = vld [vmem:[#allocation5 + $0x48] sm:$0xff]
    %v77 = vld [vmem:[#allocation5 + $0x50] sm:$0xff]
    %v78 = vld [vmem:[#allocation5 + $0x58] sm:$0xff]
    %v79 = vld [vmem:[%s3] sm:$0x1]
    %v81 = vlaneseq
    %v82 = vshrl.u32 %v81, 7
    %v83 = vsub.s32 0, %v82
    %v84 = vrot.slane %v79, %v83
    %vm86 = vcmask 785408
    %v88 = vsel %vm86, %v65, 0
    %v91 = vsel %vm86, %v66, 0
    %93 = vmatprep.subr.mxu0 0.0
    %94 = vmatpush1.msra.mxu0 %v67
    %95 = vmatprep.subr.mxu0 0.0
    %96 = vmatpush1.msra.mxu0 %v68
    %97 = vmatprep.subr.mxu0 0.0
    %98 = vmatpush1.msra.mxu0 %v69
    %99 = vmatprep.subr.mxu0 0.0
    %100 = vmatpush1.msra.mxu0 %v70
    %101 = vmatprep.subr.mxu0 0.0
    %102 = vmatpush1.msra.mxu0 %v71
    %103 = vmatprep.subr.mxu0 0.0
    %104 = vmatpush1.msra.mxu0 %v72
    %105 = vmatprep.subr.mxu0 0.0
    %106 = vmatpush1.msra.mxu0 %v73
    %107 = vmatprep.subr.mxu0 0.0
    %108 = vmatpush1.msra.mxu0 %v74
    %109 = vmatprep.subr.mxu0 0.0
    %110 = vmatpush1.msra.mxu0 %v75
    %111 = vmatprep.subr.mxu0 0.0
    %112 = vmatpush1.msra.mxu0 %v76
    %113 = vmatprep.subr.mxu0 0.0
    %114 = vmatpush1.msra.mxu0 %v77
    %115 = vmatprep.subr.mxu0 0.0
    %116 = vmatpush1.msra.mxu0 %v78
    %117 = vmatprep.subr.mxu0 0.0
    %118 = vmatpush1.msra.mxu0 0.0
    %119 = vmatprep.subr.mxu0 0.0
    %120 = vmatpush1.msra.mxu0 0.0
    %121 = vmatprep.subr.mxu0 0.0
    %122 = vmatpush1.msra.mxu0 0.0
    %123 = vmatprep.subr.mxu0 0.0
    %124 = vmatpush1.msra.mxu0 0.0
    %125 = vmatprep.subr.mxu0 0.0
    %126 = vmatpush1.msra.mxu0 0.0
    %127 = vmatprep.subr.mxu0 0.0
    %128 = vmatpush1.msra.mxu0 0.0
    %129 = vmatprep.subr.mxu0 0.0
    %130 = vmatpush1.msra.mxu0 0.0
    %131 = vmatprep.subr.mxu0 0.0
    %132 = vmatpush1.msra.mxu0 0.0
    %133 = vmatprep.subr.mxu0 0.0
    %134 = vmatpush1.msra.mxu0 0.0
    %135 = vmatprep.subr.mxu0 0.0
    %136 = vmatpush1.msra.mxu0 0.0
    %137 = vmatprep.subr.mxu0 0.0
    %138 = vmatpush1.msra.mxu0 0.0
    %139 = vmatprep.subr.mxu0 0.0
    %140 = vmatpush1.msra.mxu0 0.0
    %141 = vmatprep.subr.mxu0 0.0
    %142 = vmatpush1.msra.mxu0 0.0
    %143 = vmatprep.subr.mxu0 0.0
    %144 = vmatpush1.msra.mxu0 0.0
    %145 = vmatprep.subr.mxu0 0.0
    %146 = vmatpush1.msra.mxu0 0.0
    %147 = vmatprep.subr.mxu0 0.0
    %148 = vmatpush1.msra.mxu0 0.0
    %149 = vmatprep.subr.mxu0 0.0
    %150 = vmatpush1.msra.mxu0 0.0
    %151 = vmatprep.subr.mxu0 0.0
    %152 = vmatpush1.msra.mxu0 0.0
    %153 = vmatprep.subr.mxu0 0.0
    %154 = vmatpush1.msra.mxu0 0.0
    %155 = vmatprep.subr.mxu0 0.0
    %156 = vmatpush1.msra.mxu0 0.0
    %157 = vmatprep.mubr.f32.mxu0 0.0
    %158 = vmatmul.mubr.f32.gmra.mrb[0].mxu0 %v88
    %v159 = vpop.f32.mrb[0].mxu0
    %v160 = vadd.f32 %v84, %v159
    %v161 = vpop.f32.mrb[0].mxu0
    %162 = vmatprep.mubr.f32.mxu0 0.0
    %163 = vmatmul.mubr.f32.gmra.mrb[0].mxu0 %v91
    %v164 = vpop.f32.mrb[0].mxu0
    %v165 = vadd.f32 %v84, %v164
    %v166 = vpop.f32.mrb[0].mxu0
    %167 = vdwg.mxu0
    %v168 = vld [vmem:[#allocation7] sm:$0xff]
    %v169 = vld [vmem:[#allocation7 + $0x8] sm:$0xff]
    %v170 = vld [vmem:[#allocation7 + $0x10] sm:$0xff]
    %v171 = vld [vmem:[#allocation7 + $0x18] sm:$0xff]
    %v172 = vld [vmem:[%s5] sm:$0x1]
    %v173 = vld [vmem:[%s1] sm:$0x1]
    %vm174 = vcmp.eq.f32.partialorder %v173, 0.0
    %v175 = vsel %vm174, -1e+30, 0.0
    %v176 = vlaneseq
    %v177 = vshrl.u32 %v176, 7
    %v178 = vsub.s32 0, %v177
    %v179 = vrot.slane %v175, %v178
    %181 = vrot.lane.b32.xlu0 %v160, 96
    %v182 = vpop.permute.xlu0 %181
    %vm183 = vcmask 64512
    %v184 = vsel %vm183, %v160, 0
    %v186 = vsel %vm183, %v182, 0
    %188 = vmatprep.subr.mxu0 0.0
    %189 = vmatpush1.xpose.msra.mxu0 %v186
    %190 = vmatprep.subr.mxu0 0.0
    %191 = vmatpush1.xpose.msra.mxu0 0.0
    %192 = vmatprep.subr.mxu0 0.0
    %193 = vmatpush1.xpose.msra.mxu0 0.0
    %194 = vmatprep.subr.mxu0 0.0
    %195 = vmatpush1.xpose.msra.mxu0 0.0
    %196 = vmatprep.subr.mxu0 0.0
    %197 = vmatpush1.xpose.msra.mxu0 0.0
    %198 = vmatprep.subr.mxu0 0.0
    %199 = vmatpush1.xpose.msra.mxu0 0.0
    %200 = vmatprep.subr.mxu0 0.0
    %201 = vmatpush1.xpose.msra.mxu0 0.0
    %202 = vmatprep.subr.mxu0 0.0
    %203 = vmatpush1.xpose.msra.mxu0 0.0
    %204 = vmatprep.subr.mxu0 0.0
    %205 = vmatpush1.xpose.msra.mxu0 0.0
    %206 = vmatprep.subr.mxu0 0.0
    %207 = vmatpush1.xpose.msra.mxu0 0.0
    %208 = vmatprep.subr.mxu0 0.0
    %209 = vmatpush1.xpose.msra.mxu0 0.0
    %210 = vmatprep.subr.mxu0 0.0
    %211 = vmatpush1.xpose.msra.mxu0 0.0
    %212 = vmatprep.subr.mxu0 0.0
    %213 = vmatpush1.xpose.msra.mxu0 0.0
    %214 = vmatprep.subr.mxu0 0.0
    %215 = vmatpush1.xpose.msra.mxu0 0.0
    %216 = vmatprep.subr.mxu0 0.0
    %217 = vmatpush1.xpose.msra.mxu0 0.0
    %218 = vmatprep.subr.mxu0 0.0
    %219 = vmatpush1.xpose.msra.mxu0 0.0
    %220 = vmatprep.subr.mxu0 0.0
    %221 = vmatpush1.xpose.msra.mxu0 0.0
    %222 = vmatprep.subr.mxu0 0.0
    %223 = vmatpush1.xpose.msra.mxu0 0.0
    %224 = vmatprep.subr.mxu0 0.0
    %225 = vmatpush1.xpose.msra.mxu0 0.0
    %226 = vmatprep.subr.mxu0 0.0
    %227 = vmatpush1.xpose.msra.mxu0 0.0
    %228 = vmatprep.subr.mxu0 0.0
    %229 = vmatpush1.xpose.msra.mxu0 0.0
    %230 = vmatprep.subr.mxu0 0.0
    %231 = vmatpush1.xpose.msra.mxu0 0.0
    %232 = vmatprep.subr.mxu0 0.0
    %233 = vmatpush1.xpose.msra.mxu0 0.0
    %234 = vmatprep.subr.mxu0 0.0
    %235 = vmatpush1.xpose.msra.mxu0 0.0
    %236 = vmatprep.subr.mxu0 0.0
    %237 = vmatpush1.xpose.msra.mxu0 0.0
    %238 = vmatprep.subr.mxu0 0.0
    %239 = vmatpush1.xpose.msra.mxu0 0.0
    %240 = vmatprep.subr.mxu0 0.0
    %241 = vmatpush1.xpose.msra.mxu0 0.0
    %242 = vmatprep.subr.mxu0 0.0
    %243 = vmatpush1.xpose.msra.mxu0 0.0
    %244 = vmatprep.subr.mxu0 0.0
    %245 = vmatpush1.xpose.msra.mxu0 0.0
    %246 = vmatprep.subr.mxu0 0.0
    %247 = vmatpush1.xpose.msra.mxu0 0.0
    %248 = vmatprep.subr.mxu0 0.0
    %249 = vmatpush1.xpose.msra.mxu0 0.0
    %250 = vmatprep.subr.mxu0 0.0
    %251 = vmatpush1.xpose.msra.mxu0 0.0
    %252 = vmatprep.mubr.f32.mxu0 0.0
    %253 = vmatmul.mubr.f32.gmra.mrb[0].mxu0 %v184
    %v254 = vpop.f32.mrb[0].mxu0
    %v255 = vadd.f32 %v179, %v254
    %v256 = vpop.f32.mrb[0].mxu0
    %257 = vdwg.mxu0
    %v258 = vsel %vm183, %v255, -inf
    %259 = vmax.xlane.f32.xlu0 %v258
    %v260 = vpop.xlane.xlu0 %259
    %v261 = vsub.f32 %v255, %v260
    %v262 = vmul.f32 %v261, 1.442695
    %v263 = vpow.pop %v262
    %v264 = vsel %vm183, %v263, 0.0
    %265 = vadd.xlane.f32.xlu0 %v264
    %v266 = vpop.xlane.xlu0 %265
    %v267 = vrcp.pop %v266
    %v268 = vmul.f32 %v263, %v267
    %269 = vrot.lane.b32.xlu0 %v160, 64
    %v270 = vpop.permute.xlu0 %269
    %v273 = vsel %vm183, %v268, 0
    %275 = vmatprep.subr.mxu0 0.0
    %276 = vmatpush1.msra.mxu0 %v270
    %277 = vmatprep.subr.mxu0 0.0
    %278 = vmatpush1.msra.mxu0 0.0
    %279 = vmatprep.subr.mxu0 0.0
    %280 = vmatpush1.msra.mxu0 0.0
    %281 = vmatprep.subr.mxu0 0.0
    %282 = vmatpush1.msra.mxu0 0.0
    %283 = vmatprep.subr.mxu0 0.0
    %284 = vmatpush1.msra.mxu0 0.0
    %285 = vmatprep.subr.mxu0 0.0
    %286 = vmatpush1.msra.mxu0 0.0
    %287 = vmatprep.subr.mxu0 0.0
    %288 = vmatpush1.msra.mxu0 0.0
    %289 = vmatprep.subr.mxu0 0.0
    %290 = vmatpush1.msra.mxu0 0.0
    %291 = vmatprep.subr.mxu0 0.0
    %292 = vmatpush1.msra.mxu0 0.0
    %293 = vmatprep.subr.mxu0 0.0
    %294 = vmatpush1.msra.mxu0 0.0
    %295 = vmatprep.subr.mxu0 0.0
    %296 = vmatpush1.msra.mxu0 0.0
    %297 = vmatprep.subr.mxu0 0.0
    %298 = vmatpush1.msra.mxu0 0.0
    %299 = vmatprep.subr.mxu0 0.0
    %300 = vmatpush1.msra.mxu0 0.0
    %301 = vmatprep.subr.mxu0 0.0
    %302 = vmatpush1.msra.mxu0 0.0
    %303 = vmatprep.subr.mxu0 0.0
    %304 = vmatpush1.msra.mxu0 0.0
    %305 = vmatprep.subr.mxu0 0.0
    %306 = vmatpush1.msra.mxu0 0.0
    %307 = vmatprep.subr.mxu0 0.0
    %308 = vmatpush1.msra.mxu0 0.0
    %309 = vmatprep.subr.mxu0 0.0
    %310 = vmatpush1.msra.mxu0 0.0
    %311 = vmatprep.subr.mxu0 0.0
    %312 = vmatpush1.msra.mxu0 0.0
    %313 = vmatprep.subr.mxu0 0.0
    %314 = vmatpush1.msra.mxu0 0.0
    %315 = vmatprep.subr.mxu0 0.0
    %316 = vmatpush1.msra.mxu0 0.0
    %317 = vmatprep.subr.mxu0 0.0
    %318 = vmatpush1.msra.mxu0 0.0
    %319 = vmatprep.subr.mxu0 0.0
    %320 = vmatpush1.msra.mxu0 0.0
    %321 = vmatprep.subr.mxu0 0.0
    %322 = vmatpush1.msra.mxu0 0.0
    %323 = vmatprep.subr.mxu0 0.0
    %324 = vmatpush1.msra.mxu0 0.0
    %325 = vmatprep.subr.mxu0 0.0
    %326 = vmatpush1.msra.mxu0 0.0
    %327 = vmatprep.subr.mxu0 0.0
    %328 = vmatpush1.msra.mxu0 0.0
    %329 = vmatprep.subr.mxu0 0.0
    %330 = vmatpush1.msra.mxu0 0.0
    %331 = vmatprep.subr.mxu0 0.0
    %332 = vmatpush1.msra.mxu0 0.0
    %333 = vmatprep.subr.mxu0 0.0
    %334 = vmatpush1.msra.mxu0 0.0
    %335 = vmatprep.subr.mxu0 0.0
    %336 = vmatpush1.msra.mxu0 0.0
    %337 = vmatprep.subr.mxu0 0.0
    %338 = vmatpush1.msra.mxu0 0.0
    %339 = vmatprep.mubr.f32.mxu0 0.0
    %340 = vmatmul.mubr.f32.gmra.mrb[0].mxu0 %v273
    %v341 = vpop.f32.mrb[0].mxu0
    %v342 = vadd.f32 0.0, %v341
    %v343 = vpop.f32.mrb[0].mxu0
    %344 = vdwg.mxu0
    %345 = vrot.lane.b32.xlu0 %v160, 120
    %v346 = vpop.permute.xlu0 %345
    %347 = vrot.lane.b32.xlu0 %v160, 88
    %v348 = vpop.permute.xlu0 %347
    %v349 = vsel %vm183, %v346, 0
    %v351 = vsel %vm183, %v348, 0
    %353 = vmatprep.subr.mxu0 0.0
    %354 = vmatpush1.xpose.msra.mxu0 %v351
    %355 = vmatprep.subr.mxu0 0.0
    %356 = vmatpush1.xpose.msra.mxu0 0.0
    %357 = vmatprep.subr.mxu0 0.0
    %358 = vmatpush1.xpose.msra.mxu0 0.0
    %359 = vmatprep.subr.mxu0 0.0
    %360 = vmatpush1.xpose.msra.mxu0 0.0
    %361 = vmatprep.subr.mxu0 0.0
    %362 = vmatpush1.xpose.msra.mxu0 0.0
    %363 = vmatprep.subr.mxu0 0.0
    %364 = vmatpush1.xpose.msra.mxu0 0.0
    %365 = vmatprep.subr.mxu0 0.0
    %366 = vmatpush1.xpose.msra.mxu0 0.0
    %367 = vmatprep.subr.mxu0 0.0
    %368 = vmatpush1.xpose.msra.mxu0 0.0
    %369 = vmatprep.subr.mxu0 0.0
    %370 = vmatpush1.xpose.msra.mxu0 0.0
    %371 = vmatprep.subr.mxu0 0.0
    %372 = vmatpush1.xpose.msra.mxu0 0.0
    %373 = vmatprep.subr.mxu0 0.0
    %374 = vmatpush1.xpose.msra.mxu0 0.0
    %375 = vmatprep.subr.mxu0 0.0
    %376 = vmatpush1.xpose.msra.mxu0 0.0
    %377 = vmatprep.subr.mxu0 0.0
    %378 = vmatpush1.xpose.msra.mxu0 0.0
    %379 = vmatprep.subr.mxu0 0.0
    %380 = vmatpush1.xpose.msra.mxu0 0.0
    %381 = vmatprep.subr.mxu0 0.0
    %382 = vmatpush1.xpose.msra.mxu0 0.0
    %383 = vmatprep.subr.mxu0 0.0
    %384 = vmatpush1.xpose.msra.mxu0 0.0
    %385 = vmatprep.subr.mxu0 0.0
    %386 = vmatpush1.xpose.msra.mxu0 0.0
    %387 = vmatprep.subr.mxu0 0.0
    %388 = vmatpush1.xpose.msra.mxu0 0.0
    %389 = vmatprep.subr.mxu0 0.0
    %390 = vmatpush1.xpose.msra.mxu0 0.0
    %391 = vmatprep.subr.mxu0 0.0
    %392 = vmatpush1.xpose.msra.mxu0 0.0
    %393 = vmatprep.subr.mxu0 0.0
    %394 = vmatpush1.xpose.msra.mxu0 0.0
    %395 = vmatprep.subr.mxu0 0.0
    %396 = vmatpush1.xpose.msra.mxu0 0.0
    %397 = vmatprep.subr.mxu0 0.0
    %398 = vmatpush1.xpose.msra.mxu0 0.0
    %399 = vmatprep.subr.mxu0 0.0
    %400 = vmatpush1.xpose.msra.mxu0 0.0
    %401 = vmatprep.subr.mxu0 0.0
    %402 = vmatpush1.xpose.msra.mxu0 0.0
    %403 = vmatprep.subr.mxu0 0.0
    %404 = vmatpush1.xpose.msra.mxu0 0.0
    %405 = vmatprep.subr.mxu0 0.0
    %406 = vmatpush1.xpose.msra.mxu0 0.0
    %407 = vmatprep.subr.mxu0 0.0
    %408 = vmatpush1.xpose.msra.mxu0 0.0
    %409 = vmatprep.subr.mxu0 0.0
    %410 = vmatpush1.xpose.msra.mxu0 0.0
    %411 = vmatprep.subr.mxu0 0.0
    %412 = vmatpush1.xpose.msra.mxu0 0.0
    %413 = vmatprep.subr.mxu0 0.0
    %414 = vmatpush1.xpose.msra.mxu0 0.0
    %415 = vmatprep.subr.mxu0 0.0
    %416 = vmatpush1.xpose.msra.mxu0 0.0
    %417 = vmatprep.mubr.f32.mxu0 0.0
    %418 = vmatmul.mubr.f32.gmra.mrb[0].mxu0 %v349
    %v419 = vpop.f32.mrb[0].mxu0
    %v420 = vadd.f32 %v179, %v419
    %v421 = vpop.f32.mrb[0].mxu0
    %422 = vdwg.mxu0
    %v423 = vsel %vm183, %v420, -inf
    %424 = vmax.xlane.f32.xlu0 %v423
    %v425 = vpop.xlane.xlu0 %424
    %v426 = vsub.f32 %v420, %v425
    %v427 = vmul.f32 %v426, 1.442695
    %v428 = vpow.pop %v427
    %v429 = vsel %vm183, %v428, 0.0
    %430 = vadd.xlane.f32.xlu0 %v429
    %v431 = vpop.xlane.xlu0 %430
    %v432 = vrcp.pop %v431
    %v433 = vmul.f32 %v428, %v432
    %434 = vrot.lane.b32.xlu0 %v160, 56
    %v435 = vpop.permute.xlu0 %434
    %v438 = vsel %vm183, %v433, 0
    %440 = vmatprep.subr.mxu0 0.0
    %441 = vmatpush1.msra.mxu0 %v435
    %442 = vmatprep.subr.mxu0 0.0
    %443 = vmatpush1.msra.mxu0 0.0
    %444 = vmatprep.subr.mxu0 0.0
    %445 = vmatpush1.msra.mxu0 0.0
    %446 = vmatprep.subr.mxu0 0.0
    %447 = vmatpush1.msra.mxu0 0.0
    %448 = vmatprep.subr.mxu0 0.0
    %449 = vmatpush1.msra.mxu0 0.0
    %450 = vmatprep.subr.mxu0 0.0
    %451 = vmatpush1.msra.mxu0 0.0
    %452 = vmatprep.subr.mxu0 0.0
    %453 = vmatpush1.msra.mxu0 0.0
    %454 = vmatprep.subr.mxu0 0.0
    %455 = vmatpush1.msra.mxu0 0.0
    %456 = vmatprep.subr.mxu0 0.0
    %457 = vmatpush1.msra.mxu0 0.0
    %458 = vmatprep.subr.mxu0 0.0
    %459 = vmatpush1.msra.mxu0 0.0
    %460 = vmatprep.subr.mxu0 0.0
    %461 = vmatpush1.msra.mxu0 0.0
    %462 = vmatprep.subr.mxu0 0.0
    %463 = vmatpush1.msra.mxu0 0.0
    %464 = vmatprep.subr.mxu0 0.0
    %465 = vmatpush1.msra.mxu0 0.0
    %466 = vmatprep.subr.mxu0 0.0
    %467 = vmatpush1.msra.mxu0 0.0
    %468 = vmatprep.subr.mxu0 0.0
    %469 = vmatpush1.msra.mxu0 0.0
    %470 = vmatprep.subr.mxu0 0.0
    %471 = vmatpush1.msra.mxu0 0.0
    %472 = vmatprep.subr.mxu0 0.0
    %473 = vmatpush1.msra.mxu0 0.0
    %474 = vmatprep.subr.mxu0 0.0
    %475 = vmatpush1.msra.mxu0 0.0
    %476 = vmatprep.subr.mxu0 0.0
    %477 = vmatpush1.msra.mxu0 0.0
    %478 = vmatprep.subr.mxu0 0.0
    %479 = vmatpush1.msra.mxu0 0.0
    %480 = vmatprep.subr.mxu0 0.0
    %481 = vmatpush1.msra.mxu0 0.0
    %482 = vmatprep.subr.mxu0 0.0
    %483 = vmatpush1.msra.mxu0 0.0
    %484 = vmatprep.subr.mxu0 0.0
    %485 = vmatpush1.msra.mxu0 0.0
    %486 = vmatprep.subr.mxu0 0.0
    %487 = vmatpush1.msra.mxu0 0.0
    %488 = vmatprep.subr.mxu0 0.0
    %489 = vmatpush1.msra.mxu0 0.0
    %490 = vmatprep.subr.mxu0 0.0
    %491 = vmatpush1.msra.mxu0 0.0
    %492 = vmatprep.subr.mxu0 0.0
    %493 = vmatpush1.msra.mxu0 0.0
    %494 = vmatprep.subr.mxu0 0.0
    %495 = vmatpush1.msra.mxu0 0.0
    %496 = vmatprep.subr.mxu0 0.0
    %497 = vmatpush1.msra.mxu0 0.0
    %498 = vmatprep.subr.mxu0 0.0
    %499 = vmatpush1.msra.mxu0 0.0
    %500 = vmatprep.subr.mxu0 0.0
    %501 = vmatpush1.msra.mxu0 0.0
    %502 = vmatprep.subr.mxu0 0.0
    %503 = vmatpush1.msra.mxu0 0.0
    %504 = vmatprep.mubr.f32.mxu0 0.0
    %505 = vmatmul.mubr.f32.gmra.mrb[0].mxu0 %v438
    %v506 = vpop.f32.mrb[0].mxu0
    %v507 = vadd.f32 0.0, %v506
    %v508 = vpop.f32.mrb[0].mxu0
    %509 = vdwg.mxu0
    %v511 = vsel %vm183, %v507, 0
    %513 = vmatprep.subr.mxu0 0.0
    %514 = vmatpush1.msra.mxu0 %v169
    %515 = vmatprep.subr.mxu0 0.0
    %516 = vmatpush1.msra.mxu0 0.0
    %517 = vmatprep.subr.mxu0 0.0
    %518 = vmatpush1.msra.mxu0 0.0
    %519 = vmatprep.subr.mxu0 0.0
    %520 = vmatpush1.msra.mxu0 0.0
    %521 = vmatprep.subr.mxu0 0.0
    %522 = vmatpush1.msra.mxu0 0.0
    %523 = vmatprep.subr.mxu0 0.0
    %524 = vmatpush1.msra.mxu0 0.0
    %525 = vmatprep.subr.mxu0 0.0
    %526 = vmatpush1.msra.mxu0 0.0
    %527 = vmatprep.subr.mxu0 0.0
    %528 = vmatpush1.msra.mxu0 0.0
    %529 = vmatprep.subr.mxu0 0.0
    %530 = vmatpush1.msra.mxu0 0.0
    %531 = vmatprep.subr.mxu0 0.0
    %532 = vmatpush1.msra.mxu0 0.0
    %533 = vmatprep.subr.mxu0 0.0
    %534 = vmatpush1.msra.mxu0 0.0
    %535 = vmatprep.subr.mxu0 0.0
    %536 = vmatpush1.msra.mxu0 0.0
    %537 = vmatprep.subr.mxu0 0.0
    %538 = vmatpush1.msra.mxu0 0.0
    %539 = vmatprep.subr.mxu0 0.0
    %540 = vmatpush1.msra.mxu0 0.0
    %541 = vmatprep.subr.mxu0 0.0
    %542 = vmatpush1.msra.mxu0 0.0
    %543 = vmatprep.subr.mxu0 0.0
    %544 = vmatpush1.msra.mxu0 0.0
    %545 = vmatprep.subr.mxu0 0.0
    %546 = vmatpush1.msra.mxu0 0.0
    %547 = vmatprep.subr.mxu0 0.0
    %548 = vmatpush1.msra.mxu0 0.0
    %549 = vmatprep.subr.mxu0 0.0
    %550 = vmatpush1.msra.mxu0 0.0
    %551 = vmatprep.subr.mxu0 0.0
    %552 = vmatpush1.msra.mxu0 0.0
    %553 = vmatprep.subr.mxu0 0.0
    %554 = vmatpush1.msra.mxu0 0.0
    %555 = vmatprep.subr.mxu0 0.0
    %556 = vmatpush1.msra.mxu0 0.0
    %557 = vmatprep.subr.mxu0 0.0
    %558 = vmatpush1.msra.mxu0 0.0
    %559 = vmatprep.subr.mxu0 0.0
    %560 = vmatpush1.msra.mxu0 0.0
    %561 = vmatprep.subr.mxu0 0.0
    %562 = vmatpush1.msra.mxu0 0.0
    %563 = vmatprep.subr.mxu0 0.0
    %564 = vmatpush1.msra.mxu0 0.0
    %565 = vmatprep.subr.mxu0 0.0
    %566 = vmatpush1.msra.mxu0 0.0
    %567 = vmatprep.subr.mxu0 0.0
    %568 = vmatpush1.msra.mxu0 0.0
    %569 = vmatprep.subr.mxu0 0.0
    %570 = vmatpush1.msra.mxu0 0.0
    %571 = vmatprep.subr.mxu0 0.0
    %572 = vmatpush1.msra.mxu0 0.0
    %573 = vmatprep.subr.mxu0 0.0
    %574 = vmatpush1.msra.mxu0 0.0
    %575 = vmatprep.subr.mxu0 0.0
    %576 = vmatpush1.msra.mxu0 0.0
    %577 = vmatprep.mubr.f32.mxu0 0.0
    %578 = vmatmul.mubr.f32.gmra.mrb[0].mxu0 %v511
    %v579 = vpop.f32.mrb[0].mxu0
    %v580 = vadd.f32 0.0, %v579
    %v581 = vpop.f32.mrb[0].mxu0
    %582 = vdwg.mxu0
    %v584 = vsel %vm183, %v342, 0
    %586 = vmatprep.subr.mxu0 0.0
    %587 = vmatpush1.msra.mxu0 %v168
    %588 = vmatprep.subr.mxu0 0.0
    %589 = vmatpush1.msra.mxu0 0.0
    %590 = vmatprep.subr.mxu0 0.0
    %591 = vmatpush1.msra.mxu0 0.0
    %592 = vmatprep.subr.mxu0 0.0
    %593 = vmatpush1.msra.mxu0 0.0
    %594 = vmatprep.subr.mxu0 0.0
    %595 = vmatpush1.msra.mxu0 0.0
    %596 = vmatprep.subr.mxu0 0.0
    %597 = vmatpush1.msra.mxu0 0.0
    %598 = vmatprep.subr.mxu0 0.0
    %599 = vmatpush1.msra.mxu0 0.0
    %600 = vmatprep.subr.mxu0 0.0
    %601 = vmatpush1.msra.mxu0 0.0
    %602 = vmatprep.subr.mxu0 0.0
    %603 = vmatpush1.msra.mxu0 0.0
    %604 = vmatprep.subr.mxu0 0.0
    %605 = vmatpush1.msra.mxu0 0.0
    %606 = vmatprep.subr.mxu0 0.0
    %607 = vmatpush1.msra.mxu0 0.0
    %608 = vmatprep.subr.mxu0 0.0
    %609 = vmatpush1.msra.mxu0 0.0
    %610 = vmatprep.subr.mxu0 0.0
    %611 = vmatpush1.msra.mxu0 0.0
    %612 = vmatprep.subr.mxu0 0.0
    %613 = vmatpush1.msra.mxu0 0.0
    %614 = vmatprep.subr.mxu0 0.0
    %615 = vmatpush1.msra.mxu0 0.0
    %616 = vmatprep.subr.mxu0 0.0
    %617 = vmatpush1.msra.mxu0 0.0
    %618 = vmatprep.subr.mxu0 0.0
    %619 = vmatpush1.msra.mxu0 0.0
    %620 = vmatprep.subr.mxu0 0.0
    %621 = vmatpush1.msra.mxu0 0.0
    %622 = vmatprep.subr.mxu0 0.0
    %623 = vmatpush1.msra.mxu0 0.0
    %624 = vmatprep.subr.mxu0 0.0
    %625 = vmatpush1.msra.mxu0 0.0
    %626 = vmatprep.subr.mxu0 0.0
    %627 = vmatpush1.msra.mxu0 0.0
    %628 = vmatprep.subr.mxu0 0.0
    %629 = vmatpush1.msra.mxu0 0.0
    %630 = vmatprep.subr.mxu0 0.0
    %631 = vmatpush1.msra.mxu0 0.0
    %632 = vmatprep.subr.mxu0 0.0
    %633 = vmatpush1.msra.mxu0 0.0
    %634 = vmatprep.subr.mxu0 0.0
    %635 = vmatpush1.msra.mxu0 0.0
    %636 = vmatprep.subr.mxu0 0.0
    %637 = vmatpush1.msra.mxu0 0.0
    %638 = vmatprep.subr.mxu0 0.0
    %639 = vmatpush1.msra.mxu0 0.0
    %640 = vmatprep.subr.mxu0 0.0
    %641 = vmatpush1.msra.mxu0 0.0
    %642 = vmatprep.subr.mxu0 0.0
    %643 = vmatpush1.msra.mxu0 0.0
    %644 = vmatprep.subr.mxu0 0.0
    %645 = vmatpush1.msra.mxu0 0.0
    %646 = vmatprep.subr.mxu0 0.0
    %647 = vmatpush1.msra.mxu0 0.0
    %648 = vmatprep.subr.mxu0 0.0
    %649 = vmatpush1.msra.mxu0 0.0
    %650 = vmatprep.mubr.f32.mxu0 0.0
    %651 = vmatmul.mubr.f32.gmra.mrb[0].mxu0 %v584
    %v652 = vpop.f32.mrb[0].mxu0
    %v653 = vadd.f32 %v580, %v652
    %v654 = vpop.f32.mrb[0].mxu0
    %655 = vdwg.mxu0
    %656 = vrot.lane.b32.xlu0 %v160, 112
    %v657 = vpop.permute.xlu0 %656
    %658 = vrot.lane.b32.xlu0 %v160, 80
    %v659 = vpop.permute.xlu0 %658
    %v660 = vsel %vm183, %v657, 0
    %v662 = vsel %vm183, %v659, 0
    %664 = vmatprep.subr.mxu0 0.0
    %665 = vmatpush1.xpose.msra.mxu0 %v662
    %666 = vmatprep.subr.mxu0 0.0
    %667 = vmatpush1.xpose.msra.mxu0 0.0
    %668 = vmatprep.subr.mxu0 0.0
    %669 = vmatpush1.xpose.msra.mxu0 0.0
    %670 = vmatprep.subr.mxu0 0.0
    %671 = vmatpush1.xpose.msra.mxu0 0.0
    %672 = vmatprep.subr.mxu0 0.0
    %673 = vmatpush1.xpose.msra.mxu0 0.0
    %674 = vmatprep.subr.mxu0 0.0
    %675 = vmatpush1.xpose.msra.mxu0 0.0
    %676 = vmatprep.subr.mxu0 0.0
    %677 = vmatpush1.xpose.msra.mxu0 0.0
    %678 = vmatprep.subr.mxu0 0.0
    %679 = vmatpush1.xpose.msra.mxu0 0.0
    %680 = vmatprep.subr.mxu0 0.0
    %681 = vmatpush1.xpose.msra.mxu0 0.0
    %682 = vmatprep.subr.mxu0 0.0
    %683 = vmatpush1.xpose.msra.mxu0 0.0
    %684 = vmatprep.subr.mxu0 0.0
    %685 = vmatpush1.xpose.msra.mxu0 0.0
    %686 = vmatprep.subr.mxu0 0.0
    %687 = vmatpush1.xpose.msra.mxu0 0.0
    %688 = vmatprep.subr.mxu0 0.0
    %689 = vmatpush1.xpose.msra.mxu0 0.0
    %690 = vmatprep.subr.mxu0 0.0
    %691 = vmatpush1.xpose.msra.mxu0 0.0
    %692 = vmatprep.subr.mxu0 0.0
    %693 = vmatpush1.xpose.msra.mxu0 0.0
    %694 = vmatprep.subr.mxu0 0.0
    %695 = vmatpush1.xpose.msra.mxu0 0.0
    %696 = vmatprep.subr.mxu0 0.0
    %697 = vmatpush1.xpose.msra.mxu0 0.0
    %698 = vmatprep.subr.mxu0 0.0
    %699 = vmatpush1.xpose.msra.mxu0 0.0
    %700 = vmatprep.subr.mxu0 0.0
    %701 = vmatpush1.xpose.msra.mxu0 0.0
    %702 = vmatprep.subr.mxu0 0.0
    %703 = vmatpush1.xpose.msra.mxu0 0.0
    %704 = vmatprep.subr.mxu0 0.0
    %705 = vmatpush1.xpose.msra.mxu0 0.0
    %706 = vmatprep.subr.mxu0 0.0
    %707 = vmatpush1.xpose.msra.mxu0 0.0
    %708 = vmatprep.subr.mxu0 0.0
    %709 = vmatpush1.xpose.msra.mxu0 0.0
    %710 = vmatprep.subr.mxu0 0.0
    %711 = vmatpush1.xpose.msra.mxu0 0.0
    %712 = vmatprep.subr.mxu0 0.0
    %713 = vmatpush1.xpose.msra.mxu0 0.0
    %714 = vmatprep.subr.mxu0 0.0
    %715 = vmatpush1.xpose.msra.mxu0 0.0
    %716 = vmatprep.subr.mxu0 0.0
    %717 = vmatpush1.xpose.msra.mxu0 0.0
    %718 = vmatprep.subr.mxu0 0.0
    %719 = vmatpush1.xpose.msra.mxu0 0.0
    %720 = vmatprep.subr.mxu0 0.0
    %721 = vmatpush1.xpose.msra.mxu0 0.0
    %722 = vmatprep.subr.mxu0 0.0
    %723 = vmatpush1.xpose.msra.mxu0 0.0
    %724 = vmatprep.subr.mxu0 0.0
    %725 = vmatpush1.xpose.msra.mxu0 0.0
    %726 = vmatprep.subr.mxu0 0.0
    %727 = vmatpush1.xpose.msra.mxu0 0.0
    %728 = vmatprep.mubr.f32.mxu0 0.0
    %729 = vmatmul.mubr.f32.gmra.mrb[0].mxu0 %v660
    %v730 = vpop.f32.mrb[0].mxu0
    %v731 = vadd.f32 %v179, %v730
    %v732 = vpop.f32.mrb[0].mxu0
    %733 = vdwg.mxu0
    %v734 = vsel %vm183, %v731, -inf
    %735 = vmax.xlane.f32.xlu0 %v734
    %v736 = vpop.xlane.xlu0 %735
    %v737 = vsub.f32 %v731, %v736
    %v738 = vmul.f32 %v737, 1.442695
    %v739 = vpow.pop %v738
    %v740 = vsel %vm183, %v739, 0.0
    %741 = vadd.xlane.f32.xlu0 %v740
    %v742 = vpop.xlane.xlu0 %741
    %v743 = vrcp.pop %v742
    %v744 = vmul.f32 %v739, %v743
    %745 = vrot.lane.b32.xlu0 %v160, 48
    %v746 = vpop.permute.xlu0 %745
    %v749 = vsel %vm183, %v744, 0
    %751 = vmatprep.subr.mxu0 0.0
    %752 = vmatpush1.msra.mxu0 %v746
    %753 = vmatprep.subr.mxu0 0.0
    %754 = vmatpush1.msra.mxu0 0.0
    %755 = vmatprep.subr.mxu0 0.0
    %756 = vmatpush1.msra.mxu0 0.0
    %757 = vmatprep.subr.mxu0 0.0
    %758 = vmatpush1.msra.mxu0 0.0
    %759 = vmatprep.subr.mxu0 0.0
    %760 = vmatpush1.msra.mxu0 0.0
    %761 = vmatprep.subr.mxu0 0.0
    %762 = vmatpush1.msra.mxu0 0.0
    %763 = vmatprep.subr.mxu0 0.0
    %764 = vmatpush1.msra.mxu0 0.0
    %765 = vmatprep.subr.mxu0 0.0
    %766 = vmatpush1.msra.mxu0 0.0
    %767 = vmatprep.subr.mxu0 0.0
    %768 = vmatpush1.msra.mxu0 0.0
    %769 = vmatprep.subr.mxu0 0.0
    %770 = vmatpush1.msra.mxu0 0.0
    %771 = vmatprep.subr.mxu0 0.0
    %772 = vmatpush1.msra.mxu0 0.0
    %773 = vmatprep.subr.mxu0 0.0
    %774 = vmatpush1.msra.mxu0 0.0
    %775 = vmatprep.subr.mxu0 0.0
    %776 = vmatpush1.msra.mxu0 0.0
    %777 = vmatprep.subr.mxu0 0.0
    %778 = vmatpush1.msra.mxu0 0.0
    %779 = vmatprep.subr.mxu0 0.0
    %780 = vmatpush1.msra.mxu0 0.0
    %781 = vmatprep.subr.mxu0 0.0
    %782 = vmatpush1.msra.mxu0 0.0
    %783 = vmatprep.subr.mxu0 0.0
    %784 = vmatpush1.msra.mxu0 0.0
    %785 = vmatprep.subr.mxu0 0.0
    %786 = vmatpush1.msra.mxu0 0.0
    %787 = vmatprep.subr.mxu0 0.0
    %788 = vmatpush1.msra.mxu0 0.0
    %789 = vmatprep.subr.mxu0 0.0
    %790 = vmatpush1.msra.mxu0 0.0
    %791 = vmatprep.subr.mxu0 0.0
    %792 = vmatpush1.msra.mxu0 0.0
    %793 = vmatprep.subr.mxu0 0.0
    %794 = vmatpush1.msra.mxu0 0.0
    %795 = vmatprep.subr.mxu0 0.0
    %796 = vmatpush1.msra.mxu0 0.0
    %797 = vmatprep.subr.mxu0 0.0
    %798 = vmatpush1.msra.mxu0 0.0
    %799 = vmatprep.subr.mxu0 0.0
    %800 = vmatpush1.msra.mxu0 0.0
    %801 = vmatprep.subr.mxu0 0.0
    %802 = vmatpush1.msra.mxu0 0.0
    %803 = vmatprep.subr.mxu0 0.0
    %804 = vmatpush1.msra.mxu0 0.0
    %805 = vmatprep.subr.mxu0 0.0
    %806 = vmatpush1.msra.mxu0 0.0
    %807 = vmatprep.subr.mxu0 0.0
    %808 = vmatpush1.msra.mxu0 0.0
    %809 = vmatprep.subr.mxu0 0.0
    %810 = vmatpush1.msra.mxu0 0.0
    %811 = vmatprep.subr.mxu0 0.0
    %812 = vmatpush1.msra.mxu0 0.0
    %813 = vmatprep.subr.mxu0 0.0
    %814 = vmatpush1.msra.mxu0 0.0
    %815 = vmatprep.mubr.f32.mxu0 0.0
    %816 = vmatmul.mubr.f32.gmra.mrb[0].mxu0 %v749
    %v817 = vpop.f32.mrb[0].mxu0
    %v818 = vadd.f32 0.0, %v817
    %v819 = vpop.f32.mrb[0].mxu0
    %820 = vdwg.mxu0
    %v822 = vsel %vm183, %v818, 0
    %824 = vmatprep.subr.mxu0 0.0
    %825 = vmatpush1.msra.mxu0 %v170
    %826 = vmatprep.subr.mxu0 0.0
    %827 = vmatpush1.msra.mxu0 0.0
    %828 = vmatprep.subr.mxu0 0.0
    %829 = vmatpush1.msra.mxu0 0.0
    %830 = vmatprep.subr.mxu0 0.0
    %831 = vmatpush1.msra.mxu0 0.0
    %832 = vmatprep.subr.mxu0 0.0
    %833 = vmatpush1.msra.mxu0 0.0
    %834 = vmatprep.subr.mxu0 0.0
    %835 = vmatpush1.msra.mxu0 0.0
    %836 = vmatprep.subr.mxu0 0.0
    %837 = vmatpush1.msra.mxu0 0.0
    %838 = vmatprep.subr.mxu0 0.0
    %839 = vmatpush1.msra.mxu0 0.0
    %840 = vmatprep.subr.mxu0 0.0
    %841 = vmatpush1.msra.mxu0 0.0
    %842 = vmatprep.subr.mxu0 0.0
    %843 = vmatpush1.msra.mxu0 0.0
    %844 = vmatprep.subr.mxu0 0.0
    %845 = vmatpush1.msra.mxu0 0.0
    %846 = vmatprep.subr.mxu0 0.0
    %847 = vmatpush1.msra.mxu0 0.0
    %848 = vmatprep.subr.mxu0 0.0
    %849 = vmatpush1.msra.mxu0 0.0
    %850 = vmatprep.subr.mxu0 0.0
    %851 = vmatpush1.msra.mxu0 0.0
    %852 = vmatprep.subr.mxu0 0.0
    %853 = vmatpush1.msra.mxu0 0.0
    %854 = vmatprep.subr.mxu0 0.0
    %855 = vmatpush1.msra.mxu0 0.0
    %856 = vmatprep.subr.mxu0 0.0
    %857 = vmatpush1.msra.mxu0 0.0
    %858 = vmatprep.subr.mxu0 0.0
    %859 = vmatpush1.msra.mxu0 0.0
    %860 = vmatprep.subr.mxu0 0.0
    %861 = vmatpush1.msra.mxu0 0.0
    %862 = vmatprep.subr.mxu0 0.0
    %863 = vmatpush1.msra.mxu0 0.0
    %864 = vmatprep.subr.mxu0 0.0
    %865 = vmatpush1.msra.mxu0 0.0
    %866 = vmatprep.subr.mxu0 0.0
    %867 = vmatpush1.msra.mxu0 0.0
    %868 = vmatprep.subr.mxu0 0.0
    %869 = vmatpush1.msra.mxu0 0.0
    %870 = vmatprep.subr.mxu0 0.0
    %871 = vmatpush1.msra.mxu0 0.0
    %872 = vmatprep.subr.mxu0 0.0
    %873 = vmatpush1.msra.mxu0 0.0
    %874 = vmatprep.subr.mxu0 0.0
    %875 = vmatpush1.msra.mxu0 0.0
    %876 = vmatprep.subr.mxu0 0.0
    %877 = vmatpush1.msra.mxu0 0.0
    %878 = vmatprep.subr.mxu0 0.0
    %879 = vmatpush1.msra.mxu0 0.0
    %880 = vmatprep.subr.mxu0 0.0
    %881 = vmatpush1.msra.mxu0 0.0
    %882 = vmatprep.subr.mxu0 0.0
    %883 = vmatpush1.msra.mxu0 0.0
    %884 = vmatprep.subr.mxu0 0.0
    %885 = vmatpush1.msra.mxu0 0.0
    %886 = vmatprep.subr.mxu0 0.0
    %887 = vmatpush1.msra.mxu0 0.0
    %888 = vmatprep.mubr.f32.mxu0 0.0
    %889 = vmatmul.mubr.f32.gmra.mrb[0].mxu0 %v822
    %v890 = vpop.f32.mrb[0].mxu0
    %v891 = vadd.f32 0.0, %v890
    %v892 = vpop.f32.mrb[0].mxu0
    %893 = vdwg.mxu0
    %v894 = vadd.f32 %v653, %v891
    %895 = vrot.lane.b32.xlu0 %v160, 104
    %v896 = vpop.permute.xlu0 %895
    %897 = vrot.lane.b32.xlu0 %v160, 72
    %v898 = vpop.permute.xlu0 %897
    %v899 = vsel %vm183, %v896, 0
    %v901 = vsel %vm183, %v898, 0
    %903 = vmatprep.subr.mxu0 0.0
    %904 = vmatpush1.xpose.msra.mxu0 %v901
    %905 = vmatprep.subr.mxu0 0.0
    %906 = vmatpush1.xpose.msra.mxu0 0.0
    %907 = vmatprep.subr.mxu0 0.0
    %908 = vmatpush1.xpose.msra.mxu0 0.0
    %909 = vmatprep.subr.mxu0 0.0
    %910 = vmatpush1.xpose.msra.mxu0 0.0
    %911 = vmatprep.subr.mxu0 0.0
    %912 = vmatpush1.xpose.msra.mxu0 0.0
    %913 = vmatprep.subr.mxu0 0.0
    %914 = vmatpush1.xpose.msra.mxu0 0.0
    %915 = vmatprep.subr.mxu0 0.0
    %916 = vmatpush1.xpose.msra.mxu0 0.0
    %917 = vmatprep.subr.mxu0 0.0
    %918 = vmatpush1.xpose.msra.mxu0 0.0
    %919 = vmatprep.subr.mxu0 0.0
    %920 = vmatpush1.xpose.msra.mxu0 0.0
    %921 = vmatprep.subr.mxu0 0.0
    %922 = vmatpush1.xpose.msra.mxu0 0.0
    %923 = vmatprep.subr.mxu0 0.0
    %924 = vmatpush1.xpose.msra.mxu0 0.0
    %925 = vmatprep.subr.mxu0 0.0
    %926 = vmatpush1.xpose.msra.mxu0 0.0
    %927 = vmatprep.subr.mxu0 0.0
    %928 = vmatpush1.xpose.msra.mxu0 0.0
    %929 = vmatprep.subr.mxu0 0.0
    %930 = vmatpush1.xpose.msra.mxu0 0.0
    %931 = vmatprep.subr.mxu0 0.0
    %932 = vmatpush1.xpose.msra.mxu0 0.0
    %933 = vmatprep.subr.mxu0 0.0
    %934 = vmatpush1.xpose.msra.mxu0 0.0
    %935 = vmatprep.subr.mxu0 0.0
    %936 = vmatpush1.xpose.msra.mxu0 0.0
    %937 = vmatprep.subr.mxu0 0.0
    %938 = vmatpush1.xpose.msra.mxu0 0.0
    %939 = vmatprep.subr.mxu0 0.0
    %940 = vmatpush1.xpose.msra.mxu0 0.0
    %941 = vmatprep.subr.mxu0 0.0
    %942 = vmatpush1.xpose.msra.mxu0 0.0
    %943 = vmatprep.subr.mxu0 0.0
    %944 = vmatpush1.xpose.msra.mxu0 0.0
    %945 = vmatprep.subr.mxu0 0.0
    %946 = vmatpush1.xpose.msra.mxu0 0.0
    %947 = vmatprep.subr.mxu0 0.0
    %948 = vmatpush1.xpose.msra.mxu0 0.0
    %949 = vmatprep.subr.mxu0 0.0
    %950 = vmatpush1.xpose.msra.mxu0 0.0
    %951 = vmatprep.subr.mxu0 0.0
    %952 = vmatpush1.xpose.msra.mxu0 0.0
    %953 = vmatprep.subr.mxu0 0.0
    %954 = vmatpush1.xpose.msra.mxu0 0.0
    %955 = vmatprep.subr.mxu0 0.0
    %956 = vmatpush1.xpose.msra.mxu0 0.0
    %957 = vmatprep.subr.mxu0 0.0
    %958 = vmatpush1.xpose.msra.mxu0 0.0
    %959 = vmatprep.subr.mxu0 0.0
    %960 = vmatpush1.xpose.msra.mxu0 0.0
    %961 = vmatprep.subr.mxu0 0.0
    %962 = vmatpush1.xpose.msra.mxu0 0.0
    %963 = vmatprep.subr.mxu0 0.0
    %964 = vmatpush1.xpose.msra.mxu0 0.0
    %965 = vmatprep.subr.mxu0 0.0
    %966 = vmatpush1.xpose.msra.mxu0 0.0
    %967 = vmatprep.mubr.f32.mxu0 0.0
    %968 = vmatmul.mubr.f32.gmra.mrb[0].mxu0 %v899
    %v969 = vpop.f32.mrb[0].mxu0
    %v970 = vadd.f32 %v179, %v969
    %v971 = vpop.f32.mrb[0].mxu0
    %972 = vdwg.mxu0
    %v973 = vsel %vm183, %v970, -inf
    %974 = vmax.xlane.f32.xlu0 %v973
    %v975 = vpop.xlane.xlu0 %974
    %v976 = vsub.f32 %v970, %v975
    %v977 = vmul.f32 %v976, 1.442695
    %v978 = vpow.pop %v977
    %v979 = vsel %vm183, %v978, 0.0
    %980 = vadd.xlane.f32.xlu0 %v979
    %v981 = vpop.xlane.xlu0 %980
    %v982 = vrcp.pop %v981
    %v983 = vmul.f32 %v978, %v982
    %984 = vrot.lane.b32.xlu0 %v160, 40
    %v985 = vpop.permute.xlu0 %984
    %v988 = vsel %vm183, %v983, 0
    %990 = vmatprep.subr.mxu0 0.0
    %991 = vmatpush1.msra.mxu0 %v985
    %992 = vmatprep.subr.mxu0 0.0
    %993 = vmatpush1.msra.mxu0 0.0
    %994 = vmatprep.subr.mxu0 0.0
    %995 = vmatpush1.msra.mxu0 0.0
    %996 = vmatprep.subr.mxu0 0.0
    %997 = vmatpush1.msra.mxu0 0.0
    %998 = vmatprep.subr.mxu0 0.0
    %999 = vmatpush1.msra.mxu0 0.0
    %1000 = vmatprep.subr.mxu0 0.0
    %1001 = vmatpush1.msra.mxu0 0.0
    %1002 = vmatprep.subr.mxu0 0.0
    %1003 = vmatpush1.msra.mxu0 0.0
    %1004 = vmatprep.subr.mxu0 0.0
    %1005 = vmatpush1.msra.mxu0 0.0
    %1006 = vmatprep.subr.mxu0 0.0
    %1007 = vmatpush1.msra.mxu0 0.0
    %1008 = vmatprep.subr.mxu0 0.0
    %1009 = vmatpush1.msra.mxu0 0.0
    %1010 = vmatprep.subr.mxu0 0.0
    %1011 = vmatpush1.msra.mxu0 0.0
    %1012 = vmatprep.subr.mxu0 0.0
    %1013 = vmatpush1.msra.mxu0 0.0
    %1014 = vmatprep.subr.mxu0 0.0
    %1015 = vmatpush1.msra.mxu0 0.0
    %1016 = vmatprep.subr.mxu0 0.0
    %1017 = vmatpush1.msra.mxu0 0.0
    %1018 = vmatprep.subr.mxu0 0.0
    %1019 = vmatpush1.msra.mxu0 0.0
    %1020 = vmatprep.subr.mxu0 0.0
    %1021 = vmatpush1.msra.mxu0 0.0
    %1022 = vmatprep.subr.mxu0 0.0
    %1023 = vmatpush1.msra.mxu0 0.0
    %1024 = vmatprep.subr.mxu0 0.0
    %1025 = vmatpush1.msra.mxu0 0.0
    %1026 = vmatprep.subr.mxu0 0.0
    %1027 = vmatpush1.msra.mxu0 0.0
    %1028 = vmatprep.subr.mxu0 0.0
    %1029 = vmatpush1.msra.mxu0 0.0
    %1030 = vmatprep.subr.mxu0 0.0
    %1031 = vmatpush1.msra.mxu0 0.0
    %1032 = vmatprep.subr.mxu0 0.0
    %1033 = vmatpush1.msra.mxu0 0.0
    %1034 = vmatprep.subr.mxu0 0.0
    %1035 = vmatpush1.msra.mxu0 0.0
    %1036 = vmatprep.subr.mxu0 0.0
    %1037 = vmatpush1.msra.mxu0 0.0
    %1038 = vmatprep.subr.mxu0 0.0
    %1039 = vmatpush1.msra.mxu0 0.0
    %1040 = vmatprep.subr.mxu0 0.0
    %1041 = vmatpush1.msra.mxu0 0.0
    %1042 = vmatprep.subr.mxu0 0.0
    %1043 = vmatpush1.msra.mxu0 0.0
    %1044 = vmatprep.subr.mxu0 0.0
    %1045 = vmatpush1.msra.mxu0 0.0
    %1046 = vmatprep.subr.mxu0 0.0
    %1047 = vmatpush1.msra.mxu0 0.0
    %1048 = vmatprep.subr.mxu0 0.0
    %1049 = vmatpush1.msra.mxu0 0.0
    %1050 = vmatprep.subr.mxu0 0.0
    %1051 = vmatpush1.msra.mxu0 0.0
    %1052 = vmatprep.subr.mxu0 0.0
    %1053 = vmatpush1.msra.mxu0 0.0
    %1054 = vmatprep.mubr.f32.mxu0 0.0
    %1055 = vmatmul.mubr.f32.gmra.mrb[0].mxu0 %v988
    %v1056 = vpop.f32.mrb[0].mxu0
    %v1057 = vadd.f32 0.0, %v1056
    %v1058 = vpop.f32.mrb[0].mxu0
    %1059 = vdwg.mxu0
    %v1061 = vsel %vm183, %v1057, 0
    %1063 = vmatprep.subr.mxu0 0.0
    %1064 = vmatpush1.msra.mxu0 %v171
    %1065 = vmatprep.subr.mxu0 0.0
    %1066 = vmatpush1.msra.mxu0 0.0
    %1067 = vmatprep.subr.mxu0 0.0
    %1068 = vmatpush1.msra.mxu0 0.0
    %1069 = vmatprep.subr.mxu0 0.0
    %1070 = vmatpush1.msra.mxu0 0.0
    %1071 = vmatprep.subr.mxu0 0.0
    %1072 = vmatpush1.msra.mxu0 0.0
    %1073 = vmatprep.subr.mxu0 0.0
    %1074 = vmatpush1.msra.mxu0 0.0
    %1075 = vmatprep.subr.mxu0 0.0
    %1076 = vmatpush1.msra.mxu0 0.0
    %1077 = vmatprep.subr.mxu0 0.0
    %1078 = vmatpush1.msra.mxu0 0.0
    %1079 = vmatprep.subr.mxu0 0.0
    %1080 = vmatpush1.msra.mxu0 0.0
    %1081 = vmatprep.subr.mxu0 0.0
    %1082 = vmatpush1.msra.mxu0 0.0
    %1083 = vmatprep.subr.mxu0 0.0
    %1084 = vmatpush1.msra.mxu0 0.0
    %1085 = vmatprep.subr.mxu0 0.0
    %1086 = vmatpush1.msra.mxu0 0.0
    %1087 = vmatprep.subr.mxu0 0.0
    %1088 = vmatpush1.msra.mxu0 0.0
    %1089 = vmatprep.subr.mxu0 0.0
    %1090 = vmatpush1.msra.mxu0 0.0
    %1091 = vmatprep.subr.mxu0 0.0
    %1092 = vmatpush1.msra.mxu0 0.0
    %1093 = vmatprep.subr.mxu0 0.0
    %1094 = vmatpush1.msra.mxu0 0.0
    %1095 = vmatprep.subr.mxu0 0.0
    %1096 = vmatpush1.msra.mxu0 0.0
    %1097 = vmatprep.subr.mxu0 0.0
    %1098 = vmatpush1.msra.mxu0 0.0
    %1099 = vmatprep.subr.mxu0 0.0
    %1100 = vmatpush1.msra.mxu0 0.0
    %1101 = vmatprep.subr.mxu0 0.0
    %1102 = vmatpush1.msra.mxu0 0.0
    %1103 = vmatprep.subr.mxu0 0.0
    %1104 = vmatpush1.msra.mxu0 0.0
    %1105 = vmatprep.subr.mxu0 0.0
    %1106 = vmatpush1.msra.mxu0 0.0
    %1107 = vmatprep.subr.mxu0 0.0
    %1108 = vmatpush1.msra.mxu0 0.0
    %1109 = vmatprep.subr.mxu0 0.0
    %1110 = vmatpush1.msra.mxu0 0.0
    %1111 = vmatprep.subr.mxu0 0.0
    %1112 = vmatpush1.msra.mxu0 0.0
    %1113 = vmatprep.subr.mxu0 0.0
    %1114 = vmatpush1.msra.mxu0 0.0
    %1115 = vmatprep.subr.mxu0 0.0
    %1116 = vmatpush1.msra.mxu0 0.0
    %1117 = vmatprep.subr.mxu0 0.0
    %1118 = vmatpush1.msra.mxu0 0.0
    %1119 = vmatprep.subr.mxu0 0.0
    %1120 = vmatpush1.msra.mxu0 0.0
    %1121 = vmatprep.subr.mxu0 0.0
    %1122 = vmatpush1.msra.mxu0 0.0
    %1123 = vmatprep.subr.mxu0 0.0
    %1124 = vmatpush1.msra.mxu0 0.0
    %1125 = vmatprep.subr.mxu0 0.0
    %1126 = vmatpush1.msra.mxu0 0.0
    %1127 = vmatprep.mubr.f32.mxu0 0.0
    %1128 = vmatmul.mubr.f32.gmra.mrb[0].mxu0 %v1061
    %v1129 = vpop.f32.mrb[0].mxu0
    %v1130 = vadd.f32 0.0, %v1129
    %v1131 = vpop.f32.mrb[0].mxu0
    %1132 = vdwg.mxu0
    %v1133 = vadd.f32 %v894, %v1130
    %v1135 = vlaneseq
    %v1136 = vshrl.u32 %v1135, 7
    %v1137 = vsub.s32 0, %v1136
    %v1138 = vrot.slane %v172, %v1137
    %v1140 = vadd.f32 %v1133, %v1138
    %v1141 = vlaneseq
    %v1142 = vshrl.u32 %v1141, 7
    %v1143 = vsub.s32 0, %v1142
    %v1144 = vrot.slane %v173, %v1143
    %1146 = vbcast.lane.b32.xlu0 %v1144, 256
    %v1147 = vpop.permute.xlu0 %1146
    %v1148 = vmul.f32 %v1140, %v1147
    %vm1149 = vcmask 261120
    %1150 = vst.msk [vmem:[#allocation8] sm:$0xff] %vm1149, %v1148
    %v1151 = vld [vmem:[%s1 + $0x1] sm:$0x1]
    %vm1152 = vcmp.eq.f32.partialorder %v1151, 0.0
    %v1153 = vsel %vm1152, -1e+30, 0.0
    %v1154 = vlaneseq
    %v1155 = vshrl.u32 %v1154, 7
    %v1156 = vsub.s32 0, %v1155
    %v1157 = vrot.slane %v1153, %v1156
    %1159 = vrot.lane.b32.xlu0 %v165, 96
    %v1160 = vpop.permute.xlu0 %1159
    %v1161 = vsel %vm183, %v165, 0
    %v1163 = vsel %vm183, %v1160, 0
    %1165 = vmatprep.subr.mxu0 0.0
    %1166 = vmatpush1.xpose.msra.mxu0 %v1163
    %1167 = vmatprep.subr.mxu0 0.0
    %1168 = vmatpush1.xpose.msra.mxu0 0.0
    %1169 = vmatprep.subr.mxu0 0.0
    %1170 = vmatpush1.xpose.msra.mxu0 0.0
    %1171 = vmatprep.subr.mxu0 0.0
    %1172 = vmatpush1.xpose.msra.mxu0 0.0
    %1173 = vmatprep.subr.mxu0 0.0
    %1174 = vmatpush1.xpose.msra.mxu0 0.0
    %1175 = vmatprep.subr.mxu0 0.0
    %1176 = vmatpush1.xpose.msra.mxu0 0.0
    %1177 = vmatprep.subr.mxu0 0.0
    %1178 = vmatpush1.xpose.msra.mxu0 0.0
    %1179 = vmatprep.subr.mxu0 0.0
    %1180 = vmatpush1.xpose.msra.mxu0 0.0
    %1181 = vmatprep.subr.mxu0 0.0
    %1182 = vmatpush1.xpose.msra.mxu0 0.0
    %1183 = vmatprep.subr.mxu0 0.0
    %1184 = vmatpush1.xpose.msra.mxu0 0.0
    %1185 = vmatprep.subr.mxu0 0.0
    %1186 = vmatpush1.xpose.msra.mxu0 0.0
    %1187 = vmatprep.subr.mxu0 0.0
    %1188 = vmatpush1.xpose.msra.mxu0 0.0
    %1189 = vmatprep.subr.mxu0 0.0
    %1190 = vmatpush1.xpose.msra.mxu0 0.0
    %1191 = vmatprep.subr.mxu0 0.0
    %1192 = vmatpush1.xpose.msra.mxu0 0.0
    %1193 = vmatprep.subr.mxu0 0.0
    %1194 = vmatpush1.xpose.msra.mxu0 0.0
    %1195 = vmatprep.subr.mxu0 0.0
    %1196 = vmatpush1.xpose.msra.mxu0 0.0
    %1197 = vmatprep.subr.mxu0 0.0
    %1198 = vmatpush1.xpose.msra.mxu0 0.0
    %1199 = vmatprep.subr.mxu0 0.0
    %1200 = vmatpush1.xpose.msra.mxu0 0.0
    %1201 = vmatprep.subr.mxu0 0.0
    %1202 = vmatpush1.xpose.msra.mxu0 0.0
    %1203 = vmatprep.subr.mxu0 0.0
    %1204 = vmatpush1.xpose.msra.mxu0 0.0
    %1205 = vmatprep.subr.mxu0 0.0
    %1206 = vmatpush1.xpose.msra.mxu0 0.0
    %1207 = vmatprep.subr.mxu0 0.0
    %1208 = vmatpush1.xpose.msra.mxu0 0.0
    %1209 = vmatprep.subr.mxu0 0.0
    %1210 = vmatpush1.xpose.msra.mxu0 0.0
    %1211 = vmatprep.subr.mxu0 0.0
    %1212 = vmatpush1.xpose.msra.mxu0 0.0
    %1213 = vmatprep.subr.mxu0 0.0
    %1214 = vmatpush1.xpose.msra.mxu0 0.0
    %1215 = vmatprep.subr.mxu0 0.0
    %1216 = vmatpush1.xpose.msra.mxu0 0.0
    %1217 = vmatprep.subr.mxu0 0.0
    %1218 = vmatpush1.xpose.msra.mxu0 0.0
    %1219 = vmatprep.subr.mxu0 0.0
    %1220 = vmatpush1.xpose.msra.mxu0 0.0
    %1221 = vmatprep.subr.mxu0 0.0
    %1222 = vmatpush1.xpose.msra.mxu0 0.0
    %1223 = vmatprep.subr.mxu0 0.0
    %1224 = vmatpush1.xpose.msra.mxu0 0.0
    %1225 = vmatprep.subr.mxu0 0.0
    %1226 = vmatpush1.xpose.msra.mxu0 0.0
    %1227 = vmatprep.subr.mxu0 0.0
    %1228 = vmatpush1.xpose.msra.mxu0 0.0
    %1229 = vmatprep.mubr.f32.mxu0 0.0
    %1230 = vmatmul.mubr.f32.gmra.mrb[0].mxu0 %v1161
    %v1231 = vpop.f32.mrb[0].mxu0
    %v1232 = vadd.f32 %v1157, %v1231
    %v1233 = vpop.f32.mrb[0].mxu0
    %1234 = vdwg.mxu0
    %v1235 = vsel %vm183, %v1232, -inf
    %1236 = vmax.xlane.f32.xlu0 %v1235
    %v1237 = vpop.xlane.xlu0 %1236
    %v1238 = vsub.f32 %v1232, %v1237
    %v1239 = vmul.f32 %v1238, 1.442695
    %v1240 = vpow.pop %v1239
    %v1241 = vsel %vm183, %v1240, 0.0
    %1242 = vadd.xlane.f32.xlu0 %v1241
    %v1243 = vpop.xlane.xlu0 %1242
    %v1244 = vrcp.pop %v1243
    %v1245 = vmul.f32 %v1240, %v1244
    %1246 = vrot.lane.b32.xlu0 %v165, 64
    %v1247 = vpop.permute.xlu0 %1246
    %v1250 = vsel %vm183, %v1245, 0
    %1252 = vmatprep.subr.mxu0 0.0
    %1253 = vmatpush1.msra.mxu0 %v1247
    %1254 = vmatprep.subr.mxu0 0.0
    %1255 = vmatpush1.msra.mxu0 0.0
    %1256 = vmatprep.subr.mxu0 0.0
    %1257 = vmatpush1.msra.mxu0 0.0
    %1258 = vmatprep.subr.mxu0 0.0
    %1259 = vmatpush1.msra.mxu0 0.0
    %1260 = vmatprep.subr.mxu0 0.0
    %1261 = vmatpush1.msra.mxu0 0.0
    %1262 = vmatprep.subr.mxu0 0.0
    %1263 = vmatpush1.msra.mxu0 0.0
    %1264 = vmatprep.subr.mxu0 0.0
    %1265 = vmatpush1.msra.mxu0 0.0
    %1266 = vmatprep.subr.mxu0 0.0
    %1267 = vmatpush1.msra.mxu0 0.0
    %1268 = vmatprep.subr.mxu0 0.0
    %1269 = vmatpush1.msra.mxu0 0.0
    %1270 = vmatprep.subr.mxu0 0.0
    %1271 = vmatpush1.msra.mxu0 0.0
    %1272 = vmatprep.subr.mxu0 0.0
    %1273 = vmatpush1.msra.mxu0 0.0
    %1274 = vmatprep.subr.mxu0 0.0
    %1275 = vmatpush1.msra.mxu0 0.0
    %1276 = vmatprep.subr.mxu0 0.0
    %1277 = vmatpush1.msra.mxu0 0.0
    %1278 = vmatprep.subr.mxu0 0.0
    %1279 = vmatpush1.msra.mxu0 0.0
    %1280 = vmatprep.subr.mxu0 0.0
    %1281 = vmatpush1.msra.mxu0 0.0
    %1282 = vmatprep.subr.mxu0 0.0
    %1283 = vmatpush1.msra.mxu0 0.0
    %1284 = vmatprep.subr.mxu0 0.0
    %1285 = vmatpush1.msra.mxu0 0.0
    %1286 = vmatprep.subr.mxu0 0.0
    %1287 = vmatpush1.msra.mxu0 0.0
    %1288 = vmatprep.subr.mxu0 0.0
    %1289 = vmatpush1.msra.mxu0 0.0
    %1290 = vmatprep.subr.mxu0 0.0
    %1291 = vmatpush1.msra.mxu0 0.0
    %1292 = vmatprep.subr.mxu0 0.0
    %1293 = vmatpush1.msra.mxu0 0.0
    %1294 = vmatprep.subr.mxu0 0.0
    %1295 = vmatpush1.msra.mxu0 0.0
    %1296 = vmatprep.subr.mxu0 0.0
    %1297 = vmatpush1.msra.mxu0 0.0
    %1298 = vmatprep.subr.mxu0 0.0
    %1299 = vmatpush1.msra.mxu0 0.0
    %1300 = vmatprep.subr.mxu0 0.0
    %1301 = vmatpush1.msra.mxu0 0.0
    %1302 = vmatprep.subr.mxu0 0.0
    %1303 = vmatpush1.msra.mxu0 0.0
    %1304 = vmatprep.subr.mxu0 0.0
    %1305 = vmatpush1.msra.mxu0 0.0
    %1306 = vmatprep.subr.mxu0 0.0
    %1307 = vmatpush1.msra.mxu0 0.0
    %1308 = vmatprep.subr.mxu0 0.0
    %1309 = vmatpush1.msra.mxu0 0.0
    %1310 = vmatprep.subr.mxu0 0.0
    %1311 = vmatpush1.msra.mxu0 0.0
    %1312 = vmatprep.subr.mxu0 0.0
    %1313 = vmatpush1.msra.mxu0 0.0
    %1314 = vmatprep.subr.mxu0 0.0
    %1315 = vmatpush1.msra.mxu0 0.0
    %1316 = vmatprep.mubr.f32.mxu0 0.0
    %1317 = vmatmul.mubr.f32.gmra.mrb[0].mxu0 %v1250
    %v1318 = vpop.f32.mrb[0].mxu0
    %v1319 = vadd.f32 0.0, %v1318
    %v1320 = vpop.f32.mrb[0].mxu0
    %1321 = vdwg.mxu0
    %1322 = vrot.lane.b32.xlu0 %v165, 120
    %v1323 = vpop.permute.xlu0 %1322
    %1324 = vrot.lane.b32.xlu0 %v165, 88
    %v1325 = vpop.permute.xlu0 %1324
    %v1326 = vsel %vm183, %v1323, 0
    %v1328 = vsel %vm183, %v1325, 0
    %1330 = vmatprep.subr.mxu0 0.0
    %1331 = vmatpush1.xpose.msra.mxu0 %v1328
    %1332 = vmatprep.subr.mxu0 0.0
    %1333 = vmatpush1.xpose.msra.mxu0 0.0
    %1334 = vmatprep.subr.mxu0 0.0
    %1335 = vmatpush1.xpose.msra.mxu0 0.0
    %1336 = vmatprep.subr.mxu0 0.0
    %1337 = vmatpush1.xpose.msra.mxu0 0.0
    %1338 = vmatprep.subr.mxu0 0.0
    %1339 = vmatpush1.xpose.msra.mxu0 0.0
    %1340 = vmatprep.subr.mxu0 0.0
    %1341 = vmatpush1.xpose.msra.mxu0 0.0
    %1342 = vmatprep.subr.mxu0 0.0
    %1343 = vmatpush1.xpose.msra.mxu0 0.0
    %1344 = vmatprep.subr.mxu0 0.0
    %1345 = vmatpush1.xpose.msra.mxu0 0.0
    %1346 = vmatprep.subr.mxu0 0.0
    %1347 = vmatpush1.xpose.msra.mxu0 0.0
    %1348 = vmatprep.subr.mxu0 0.0
    %1349 = vmatpush1.xpose.msra.mxu0 0.0
    %1350 = vmatprep.subr.mxu0 0.0
    %1351 = vmatpush1.xpose.msra.mxu0 0.0
    %1352 = vmatprep.subr.mxu0 0.0
    %1353 = vmatpush1.xpose.msra.mxu0 0.0
    %1354 = vmatprep.subr.mxu0 0.0
    %1355 = vmatpush1.xpose.msra.mxu0 0.0
    %1356 = vmatprep.subr.mxu0 0.0
    %1357 = vmatpush1.xpose.msra.mxu0 0.0
    %1358 = vmatprep.subr.mxu0 0.0
    %1359 = vmatpush1.xpose.msra.mxu0 0.0
    %1360 = vmatprep.subr.mxu0 0.0
    %1361 = vmatpush1.xpose.msra.mxu0 0.0
    %1362 = vmatprep.subr.mxu0 0.0
    %1363 = vmatpush1.xpose.msra.mxu0 0.0
    %1364 = vmatprep.subr.mxu0 0.0
    %1365 = vmatpush1.xpose.msra.mxu0 0.0
    %1366 = vmatprep.subr.mxu0 0.0
    %1367 = vmatpush1.xpose.msra.mxu0 0.0
    %1368 = vmatprep.subr.mxu0 0.0
    %1369 = vmatpush1.xpose.msra.mxu0 0.0
    %1370 = vmatprep.subr.mxu0 0.0
    %1371 = vmatpush1.xpose.msra.mxu0 0.0
    %1372 = vmatprep.subr.mxu0 0.0
    %1373 = vmatpush1.xpose.msra.mxu0 0.0
    %1374 = vmatprep.subr.mxu0 0.0
    %1375 = vmatpush1.xpose.msra.mxu0 0.0
    %1376 = vmatprep.subr.mxu0 0.0
    %1377 = vmatpush1.xpose.msra.mxu0 0.0
    %1378 = vmatprep.subr.mxu0 0.0
    %1379 = vmatpush1.xpose.msra.mxu0 0.0
    %1380 = vmatprep.subr.mxu0 0.0
    %1381 = vmatpush1.xpose.msra.mxu0 0.0
    %1382 = vmatprep.subr.mxu0 0.0
    %1383 = vmatpush1.xpose.msra.mxu0 0.0
    %1384 = vmatprep.subr.mxu0 0.0
    %1385 = vmatpush1.xpose.msra.mxu0 0.0
    %1386 = vmatprep.subr.mxu0 0.0
    %1387 = vmatpush1.xpose.msra.mxu0 0.0
    %1388 = vmatprep.subr.mxu0 0.0
    %1389 = vmatpush1.xpose.msra.mxu0 0.0
    %1390 = vmatprep.subr.mxu0 0.0
    %1391 = vmatpush1.xpose.msra.mxu0 0.0
    %1392 = vmatprep.subr.mxu0 0.0
    %1393 = vmatpush1.xpose.msra.mxu0 0.0
    %1394 = vmatprep.mubr.f32.mxu0 0.0
    %1395 = vmatmul.mubr.f32.gmra.mrb[0].mxu0 %v1326
    %v1396 = vpop.f32.mrb[0].mxu0
    %v1397 = vadd.f32 %v1157, %v1396
    %v1398 = vpop.f32.mrb[0].mxu0
    %1399 = vdwg.mxu0
    %v1400 = vsel %vm183, %v1397, -inf
    %1401 = vmax.xlane.f32.xlu0 %v1400
    %v1402 = vpop.xlane.xlu0 %1401
    %v1403 = vsub.f32 %v1397, %v1402
    %v1404 = vmul.f32 %v1403, 1.442695
    %v1405 = vpow.pop %v1404
    %v1406 = vsel %vm183, %v1405, 0.0
    %1407 = vadd.xlane.f32.xlu0 %v1406
    %v1408 = vpop.xlane.xlu0 %1407
    %v1409 = vrcp.pop %v1408
    %v1410 = vmul.f32 %v1405, %v1409
    %1411 = vrot.lane.b32.xlu0 %v165, 56
    %v1412 = vpop.permute.xlu0 %1411
    %v1415 = vsel %vm183, %v1410, 0
    %1417 = vmatprep.subr.mxu0 0.0
    %1418 = vmatpush1.msra.mxu0 %v1412
    %1419 = vmatprep.subr.mxu0 0.0
    %1420 = vmatpush1.msra.mxu0 0.0
    %1421 = vmatprep.subr.mxu0 0.0
    %1422 = vmatpush1.msra.mxu0 0.0
    %1423 = vmatprep.subr.mxu0 0.0
    %1424 = vmatpush1.msra.mxu0 0.0
    %1425 = vmatprep.subr.mxu0 0.0
    %1426 = vmatpush1.msra.mxu0 0.0
    %1427 = vmatprep.subr.mxu0 0.0
    %1428 = vmatpush1.msra.mxu0 0.0
    %1429 = vmatprep.subr.mxu0 0.0
    %1430 = vmatpush1.msra.mxu0 0.0
    %1431 = vmatprep.subr.mxu0 0.0
    %1432 = vmatpush1.msra.mxu0 0.0
    %1433 = vmatprep.subr.mxu0 0.0
    %1434 = vmatpush1.msra.mxu0 0.0
    %1435 = vmatprep.subr.mxu0 0.0
    %1436 = vmatpush1.msra.mxu0 0.0
    %1437 = vmatprep.subr.mxu0 0.0
    %1438 = vmatpush1.msra.mxu0 0.0
    %1439 = vmatprep.subr.mxu0 0.0
    %1440 = vmatpush1.msra.mxu0 0.0
    %1441 = vmatprep.subr.mxu0 0.0
    %1442 = vmatpush1.msra.mxu0 0.0
    %1443 = vmatprep.subr.mxu0 0.0
    %1444 = vmatpush1.msra.mxu0 0.0
    %1445 = vmatprep.subr.mxu0 0.0
    %1446 = vmatpush1.msra.mxu0 0.0
    %1447 = vmatprep.subr.mxu0 0.0
    %1448 = vmatpush1.msra.mxu0 0.0
    %1449 = vmatprep.subr.mxu0 0.0
    %1450 = vmatpush1.msra.mxu0 0.0
    %1451 = vmatprep.subr.mxu0 0.0
    %1452 = vmatpush1.msra.mxu0 0.0
    %1453 = vmatprep.subr.mxu0 0.0
    %1454 = vmatpush1.msra.mxu0 0.0
    %1455 = vmatprep.subr.mxu0 0.0
    %1456 = vmatpush1.msra.mxu0 0.0
    %1457 = vmatprep.subr.mxu0 0.0
    %1458 = vmatpush1.msra.mxu0 0.0
    %1459 = vmatprep.subr.mxu0 0.0
    %1460 = vmatpush1.msra.mxu0 0.0
    %1461 = vmatprep.subr.mxu0 0.0
    %1462 = vmatpush1.msra.mxu0 0.0
    %1463 = vmatprep.subr.mxu0 0.0
    %1464 = vmatpush1.msra.mxu0 0.0
    %1465 = vmatprep.subr.mxu0 0.0
    %1466 = vmatpush1.msra.mxu0 0.0
    %1467 = vmatprep.subr.mxu0 0.0
    %1468 = vmatpush1.msra.mxu0 0.0
    %1469 = vmatprep.subr.mxu0 0.0
    %1470 = vmatpush1.msra.mxu0 0.0
    %1471 = vmatprep.subr.mxu0 0.0
    %1472 = vmatpush1.msra.mxu0 0.0
    %1473 = vmatprep.subr.mxu0 0.0
    %1474 = vmatpush1.msra.mxu0 0.0
    %1475 = vmatprep.subr.mxu0 0.0
    %1476 = vmatpush1.msra.mxu0 0.0
    %1477 = vmatprep.subr.mxu0 0.0
    %1478 = vmatpush1.msra.mxu0 0.0
    %1479 = vmatprep.subr.mxu0 0.0
    %1480 = vmatpush1.msra.mxu0 0.0
    %1481 = vmatprep.mubr.f32.mxu0 0.0
    %1482 = vmatmul.mubr.f32.gmra.mrb[0].mxu0 %v1415
    %v1483 = vpop.f32.mrb[0].mxu0
    %v1484 = vadd.f32 0.0, %v1483
    %v1485 = vpop.f32.mrb[0].mxu0
    %1486 = vdwg.mxu0
    %v1488 = vsel %vm183, %v1484, 0
    %1490 = vmatprep.subr.mxu0 0.0
    %1491 = vmatpush1.msra.mxu0 %v169
    %1492 = vmatprep.subr.mxu0 0.0
    %1493 = vmatpush1.msra.mxu0 0.0
    %1494 = vmatprep.subr.mxu0 0.0
    %1495 = vmatpush1.msra.mxu0 0.0
    %1496 = vmatprep.subr.mxu0 0.0
    %1497 = vmatpush1.msra.mxu0 0.0
    %1498 = vmatprep.subr.mxu0 0.0
    %1499 = vmatpush1.msra.mxu0 0.0
    %1500 = vmatprep.subr.mxu0 0.0
    %1501 = vmatpush1.msra.mxu0 0.0
    %1502 = vmatprep.subr.mxu0 0.0
    %1503 = vmatpush1.msra.mxu0 0.0
    %1504 = vmatprep.subr.mxu0 0.0
    %1505 = vmatpush1.msra.mxu0 0.0
    %1506 = vmatprep.subr.mxu0 0.0
    %1507 = vmatpush1.msra.mxu0 0.0
    %1508 = vmatprep.subr.mxu0 0.0
    %1509 = vmatpush1.msra.mxu0 0.0
    %1510 = vmatprep.subr.mxu0 0.0
    %1511 = vmatpush1.msra.mxu0 0.0
    %1512 = vmatprep.subr.mxu0 0.0
    %1513 = vmatpush1.msra.mxu0 0.0
    %1514 = vmatprep.subr.mxu0 0.0
    %1515 = vmatpush1.msra.mxu0 0.0
    %1516 = vmatprep.subr.mxu0 0.0
    %1517 = vmatpush1.msra.mxu0 0.0
    %1518 = vmatprep.subr.mxu0 0.0
    %1519 = vmatpush1.msra.mxu0 0.0
    %1520 = vmatprep.subr.mxu0 0.0
    %1521 = vmatpush1.msra.mxu0 0.0
    %1522 = vmatprep.subr.mxu0 0.0
    %1523 = vmatpush1.msra.mxu0 0.0
    %1524 = vmatprep.subr.mxu0 0.0
    %1525 = vmatpush1.msra.mxu0 0.0
    %1526 = vmatprep.subr.mxu0 0.0
    %1527 = vmatpush1.msra.mxu0 0.0
    %1528 = vmatprep.subr.mxu0 0.0
    %1529 = vmatpush1.msra.mxu0 0.0
    %1530 = vmatprep.subr.mxu0 0.0
    %1531 = vmatpush1.msra.mxu0 0.0
    %1532 = vmatprep.subr.mxu0 0.0
    %1533 = vmatpush1.msra.mxu0 0.0
    %1534 = vmatprep.subr.mxu0 0.0
    %1535 = vmatpush1.msra.mxu0 0.0
    %1536 = vmatprep.subr.mxu0 0.0
    %1537 = vmatpush1.msra.mxu0 0.0
    %1538 = vmatprep.subr.mxu0 0.0
    %1539 = vmatpush1.msra.mxu0 0.0
    %1540 = vmatprep.subr.mxu0 0.0
    %1541 = vmatpush1.msra.mxu0 0.0
    %1542 = vmatprep.subr.mxu0 0.0
    %1543 = vmatpush1.msra.mxu0 0.0
    %1544 = vmatprep.subr.mxu0 0.0
    %1545 = vmatpush1.msra.mxu0 0.0
    %1546 = vmatprep.subr.mxu0 0.0
    %1547 = vmatpush1.msra.mxu0 0.0
    %1548 = vmatprep.subr.mxu0 0.0
    %1549 = vmatpush1.msra.mxu0 0.0
    %1550 = vmatprep.subr.mxu0 0.0
    %1551 = vmatpush1.msra.mxu0 0.0
    %1552 = vmatprep.subr.mxu0 0.0
    %1553 = vmatpush1.msra.mxu0 0.0
    %1554 = vmatprep.mubr.f32.mxu0 0.0
    %1555 = vmatmul.mubr.f32.gmra.mrb[0].mxu0 %v1488
    %v1556 = vpop.f32.mrb[0].mxu0
    %v1557 = vadd.f32 0.0, %v1556
    %v1558 = vpop.f32.mrb[0].mxu0
    %1559 = vdwg.mxu0
    %v1561 = vsel %vm183, %v1319, 0
    %1563 = vmatprep.subr.mxu0 0.0
    %1564 = vmatpush1.msra.mxu0 %v168
    %1565 = vmatprep.subr.mxu0 0.0
    %1566 = vmatpush1.msra.mxu0 0.0
    %1567 = vmatprep.subr.mxu0 0.0
    %1568 = vmatpush1.msra.mxu0 0.0
    %1569 = vmatprep.subr.mxu0 0.0
    %1570 = vmatpush1.msra.mxu0 0.0
    %1571 = vmatprep.subr.mxu0 0.0
    %1572 = vmatpush1.msra.mxu0 0.0
    %1573 = vmatprep.subr.mxu0 0.0
    %1574 = vmatpush1.msra.mxu0 0.0
    %1575 = vmatprep.subr.mxu0 0.0
    %1576 = vmatpush1.msra.mxu0 0.0
    %1577 = vmatprep.subr.mxu0 0.0
    %1578 = vmatpush1.msra.mxu0 0.0
    %1579 = vmatprep.subr.mxu0 0.0
    %1580 = vmatpush1.msra.mxu0 0.0
    %1581 = vmatprep.subr.mxu0 0.0
    %1582 = vmatpush1.msra.mxu0 0.0
    %1583 = vmatprep.subr.mxu0 0.0
    %1584 = vmatpush1.msra.mxu0 0.0
    %1585 = vmatprep.subr.mxu0 0.0
    %1586 = vmatpush1.msra.mxu0 0.0
    %1587 = vmatprep.subr.mxu0 0.0
    %1588 = vmatpush1.msra.mxu0 0.0
    %1589 = vmatprep.subr.mxu0 0.0
    %1590 = vmatpush1.msra.mxu0 0.0
    %1591 = vmatprep.subr.mxu0 0.0
    %1592 = vmatpush1.msra.mxu0 0.0
    %1593 = vmatprep.subr.mxu0 0.0
    %1594 = vmatpush1.msra.mxu0 0.0
    %1595 = vmatprep.subr.mxu0 0.0
    %1596 = vmatpush1.msra.mxu0 0.0
    %1597 = vmatprep.subr.mxu0 0.0
    %1598 = vmatpush1.msra.mxu0 0.0
    %1599 = vmatprep.subr.mxu0 0.0
    %1600 = vmatpush1.msra.mxu0 0.0
    %1601 = vmatprep.subr.mxu0 0.0
    %1602 = vmatpush1.msra.mxu0 0.0
    %1603 = vmatprep.subr.mxu0 0.0
    %1604 = vmatpush1.msra.mxu0 0.0
    %1605 = vmatprep.subr.mxu0 0.0
    %1606 = vmatpush1.msra.mxu0 0.0
    %1607 = vmatprep.subr.mxu0 0.0
    %1608 = vmatpush1.msra.mxu0 0.0
    %1609 = vmatprep.subr.mxu0 0.0
    %1610 = vmatpush1.msra.mxu0 0.0
    %1611 = vmatprep.subr.mxu0 0.0
    %1612 = vmatpush1.msra.mxu0 0.0
    %1613 = vmatprep.subr.mxu0 0.0
    %1614 = vmatpush1.msra.mxu0 0.0
    %1615 = vmatprep.subr.mxu0 0.0
    %1616 = vmatpush1.msra.mxu0 0.0
    %1617 = vmatprep.subr.mxu0 0.0
    %1618 = vmatpush1.msra.mxu0 0.0
    %1619 = vmatprep.subr.mxu0 0.0
    %1620 = vmatpush1.msra.mxu0 0.0
    %1621 = vmatprep.subr.mxu0 0.0
    %1622 = vmatpush1.msra.mxu0 0.0
    %1623 = vmatprep.subr.mxu0 0.0
    %1624 = vmatpush1.msra.mxu0 0.0
    %1625 = vmatprep.subr.mxu0 0.0
    %1626 = vmatpush1.msra.mxu0 0.0
    %1627 = vmatprep.mubr.f32.mxu0 0.0
    %1628 = vmatmul.mubr.f32.gmra.mrb[0].mxu0 %v1561
    %v1629 = vpop.f32.mrb[0].mxu0
    %v1630 = vadd.f32 %v1557, %v1629
    %v1631 = vpop.f32.mrb[0].mxu0
    %1632 = vdwg.mxu0
    %1633 = vrot.lane.b32.xlu0 %v165, 112
    %v1634 = vpop.permute.xlu0 %1633
    %1635 = vrot.lane.b32.xlu0 %v165, 80
    %v1636 = vpop.permute.xlu0 %1635
    %v1637 = vsel %vm183, %v1634, 0
    %v1639 = vsel %vm183, %v1636, 0
    %1641 = vmatprep.subr.mxu0 0.0
    %1642 = vmatpush1.xpose.msra.mxu0 %v1639
    %1643 = vmatprep.subr.mxu0 0.0
    %1644 = vmatpush1.xpose.msra.mxu0 0.0
    %1645 = vmatprep.subr.mxu0 0.0
    %1646 = vmatpush1.xpose.msra.mxu0 0.0
    %1647 = vmatprep.subr.mxu0 0.0
    %1648 = vmatpush1.xpose.msra.mxu0 0.0
    %1649 = vmatprep.subr.mxu0 0.0
    %1650 = vmatpush1.xpose.msra.mxu0 0.0
    %1651 = vmatprep.subr.mxu0 0.0
    %1652 = vmatpush1.xpose.msra.mxu0 0.0
    %1653 = vmatprep.subr.mxu0 0.0
    %1654 = vmatpush1.xpose.msra.mxu0 0.0
    %1655 = vmatprep.subr.mxu0 0.0
    %1656 = vmatpush1.xpose.msra.mxu0 0.0
    %1657 = vmatprep.subr.mxu0 0.0
    %1658 = vmatpush1.xpose.msra.mxu0 0.0
    %1659 = vmatprep.subr.mxu0 0.0
    %1660 = vmatpush1.xpose.msra.mxu0 0.0
    %1661 = vmatprep.subr.mxu0 0.0
    %1662 = vmatpush1.xpose.msra.mxu0 0.0
    %1663 = vmatprep.subr.mxu0 0.0
    %1664 = vmatpush1.xpose.msra.mxu0 0.0
    %1665 = vmatprep.subr.mxu0 0.0
    %1666 = vmatpush1.xpose.msra.mxu0 0.0
    %1667 = vmatprep.subr.mxu0 0.0
    %1668 = vmatpush1.xpose.msra.mxu0 0.0
    %1669 = vmatprep.subr.mxu0 0.0
    %1670 = vmatpush1.xpose.msra.mxu0 0.0
    %1671 = vmatprep.subr.mxu0 0.0
    %1672 = vmatpush1.xpose.msra.mxu0 0.0
    %1673 = vmatprep.subr.mxu0 0.0
    %1674 = vmatpush1.xpose.msra.mxu0 0.0
    %1675 = vmatprep.subr.mxu0 0.0
    %1676 = vmatpush1.xpose.msra.mxu0 0.0
    %1677 = vmatprep.subr.mxu0 0.0
    %1678 = vmatpush1.xpose.msra.mxu0 0.0
    %1679 = vmatprep.subr.mxu0 0.0
    %1680 = vmatpush1.xpose.msra.mxu0 0.0
    %1681 = vmatprep.subr.mxu0 0.0
    %1682 = vmatpush1.xpose.msra.mxu0 0.0
    %1683 = vmatprep.subr.mxu0 0.0
    %1684 = vmatpush1.xpose.msra.mxu0 0.0
    %1685 = vmatprep.subr.mxu0 0.0
    %1686 = vmatpush1.xpose.msra.mxu0 0.0
    %1687 = vmatprep.subr.mxu0 0.0
    %1688 = vmatpush1.xpose.msra.mxu0 0.0
    %1689 = vmatprep.subr.mxu0 0.0
    %1690 = vmatpush1.xpose.msra.mxu0 0.0
    %1691 = vmatprep.subr.mxu0 0.0
    %1692 = vmatpush1.xpose.msra.mxu0 0.0
    %1693 = vmatprep.subr.mxu0 0.0
    %1694 = vmatpush1.xpose.msra.mxu0 0.0
    %1695 = vmatprep.subr.mxu0 0.0
    %1696 = vmatpush1.xpose.msra.mxu0 0.0
    %1697 = vmatprep.subr.mxu0 0.0
    %1698 = vmatpush1.xpose.msra.mxu0 0.0
    %1699 = vmatprep.subr.mxu0 0.0
    %1700 = vmatpush1.xpose.msra.mxu0 0.0
    %1701 = vmatprep.subr.mxu0 0.0
    %1702 = vmatpush1.xpose.msra.mxu0 0.0
    %1703 = vmatprep.subr.mxu0 0.0
    %1704 = vmatpush1.xpose.msra.mxu0 0.0
    %1705 = vmatprep.mubr.f32.mxu0 0.0
    %1706 = vmatmul.mubr.f32.gmra.mrb[0].mxu0 %v1637
    %v1707 = vpop.f32.mrb[0].mxu0
    %v1708 = vadd.f32 %v1157, %v1707
    %v1709 = vpop.f32.mrb[0].mxu0
    %1710 = vdwg.mxu0
    %v1711 = vsel %vm183, %v1708, -inf
    %1712 = vmax.xlane.f32.xlu0 %v1711
    %v1713 = vpop.xlane.xlu0 %1712
    %v1714 = vsub.f32 %v1708, %v1713
    %v1715 = vmul.f32 %v1714, 1.442695
    %v1716 = vpow.pop %v1715
    %v1717 = vsel %vm183, %v1716, 0.0
    %1718 = vadd.xlane.f32.xlu0 %v1717
    %v1719 = vpop.xlane.xlu0 %1718
    %v1720 = vrcp.pop %v1719
    %v1721 = vmul.f32 %v1716, %v1720
    %1722 = vrot.lane.b32.xlu0 %v165, 48
    %v1723 = vpop.permute.xlu0 %1722
    %v1726 = vsel %vm183, %v1721, 0
    %1728 = vmatprep.subr.mxu0 0.0
    %1729 = vmatpush1.msra.mxu0 %v1723
    %1730 = vmatprep.subr.mxu0 0.0
    %1731 = vmatpush1.msra.mxu0 0.0
    %1732 = vmatprep.subr.mxu0 0.0
    %1733 = vmatpush1.msra.mxu0 0.0
    %1734 = vmatprep.subr.mxu0 0.0
    %1735 = vmatpush1.msra.mxu0 0.0
    %1736 = vmatprep.subr.mxu0 0.0
    %1737 = vmatpush1.msra.mxu0 0.0
    %1738 = vmatprep.subr.mxu0 0.0
    %1739 = vmatpush1.msra.mxu0 0.0
    %1740 = vmatprep.subr.mxu0 0.0
    %1741 = vmatpush1.msra.mxu0 0.0
    %1742 = vmatprep.subr.mxu0 0.0
    %1743 = vmatpush1.msra.mxu0 0.0
    %1744 = vmatprep.subr.mxu0 0.0
    %1745 = vmatpush1.msra.mxu0 0.0
    %1746 = vmatprep.subr.mxu0 0.0
    %1747 = vmatpush1.msra.mxu0 0.0
    %1748 = vmatprep.subr.mxu0 0.0
    %1749 = vmatpush1.msra.mxu0 0.0
    %1750 = vmatprep.subr.mxu0 0.0
    %1751 = vmatpush1.msra.mxu0 0.0
    %1752 = vmatprep.subr.mxu0 0.0
    %1753 = vmatpush1.msra.mxu0 0.0
    %1754 = vmatprep.subr.mxu0 0.0
    %1755 = vmatpush1.msra.mxu0 0.0
    %1756 = vmatprep.subr.mxu0 0.0
    %1757 = vmatpush1.msra.mxu0 0.0
    %1758 = vmatprep.subr.mxu0 0.0
    %1759 = vmatpush1.msra.mxu0 0.0
    %1760 = vmatprep.subr.mxu0 0.0
    %1761 = vmatpush1.msra.mxu0 0.0
    %1762 = vmatprep.subr.mxu0 0.0
    %1763 = vmatpush1.msra.mxu0 0.0
    %1764 = vmatprep.subr.mxu0 0.0
    %1765 = vmatpush1.msra.mxu0 0.0
    %1766 = vmatprep.subr.mxu0 0.0
    %1767 = vmatpush1.msra.mxu0 0.0
    %1768 = vmatprep.subr.mxu0 0.0
    %1769 = vmatpush1.msra.mxu0 0.0
    %1770 = vmatprep.subr.mxu0 0.0
    %1771 = vmatpush1.msra.mxu0 0.0
    %1772 = vmatprep.subr.mxu0 0.0
    %1773 = vmatpush1.msra.mxu0 0.0
    %1774 = vmatprep.subr.mxu0 0.0
    %1775 = vmatpush1.msra.mxu0 0.0
    %1776 = vmatprep.subr.mxu0 0.0
    %1777 = vmatpush1.msra.mxu0 0.0
    %1778 = vmatprep.subr.mxu0 0.0
    %1779 = vmatpush1.msra.mxu0 0.0
    %1780 = vmatprep.subr.mxu0 0.0
    %1781 = vmatpush1.msra.mxu0 0.0
    %1782 = vmatprep.subr.mxu0 0.0
    %1783 = vmatpush1.msra.mxu0 0.0
    %1784 = vmatprep.subr.mxu0 0.0
    %1785 = vmatpush1.msra.mxu0 0.0
    %1786 = vmatprep.subr.mxu0 0.0
    %1787 = vmatpush1.msra.mxu0 0.0
    %1788 = vmatprep.subr.mxu0 0.0
    %1789 = vmatpush1.msra.mxu0 0.0
    %1790 = vmatprep.subr.mxu0 0.0
    %1791 = vmatpush1.msra.mxu0 0.0
    %1792 = vmatprep.mubr.f32.mxu0 0.0
    %1793 = vmatmul.mubr.f32.gmra.mrb[0].mxu0 %v1726
    %v1794 = vpop.f32.mrb[0].mxu0
    %v1795 = vadd.f32 0.0, %v1794
    %v1796 = vpop.f32.mrb[0].mxu0
    %1797 = vdwg.mxu0
    %v1799 = vsel %vm183, %v1795, 0
    %1801 = vmatprep.subr.mxu0 0.0
    %1802 = vmatpush1.msra.mxu0 %v170
    %1803 = vmatprep.subr.mxu0 0.0
    %1804 = vmatpush1.msra.mxu0 0.0
    %1805 = vmatprep.subr.mxu0 0.0
    %1806 = vmatpush1.msra.mxu0 0.0
    %1807 = vmatprep.subr.mxu0 0.0
    %1808 = vmatpush1.msra.mxu0 0.0
    %1809 = vmatprep.subr.mxu0 0.0
    %1810 = vmatpush1.msra.mxu0 0.0
    %1811 = vmatprep.subr.mxu0 0.0
    %1812 = vmatpush1.msra.mxu0 0.0
    %1813 = vmatprep.subr.mxu0 0.0
    %1814 = vmatpush1.msra.mxu0 0.0
    %1815 = vmatprep.subr.mxu0 0.0
    %1816 = vmatpush1.msra.mxu0 0.0
    %1817 = vmatprep.subr.mxu0 0.0
    %1818 = vmatpush1.msra.mxu0 0.0
    %1819 = vmatprep.subr.mxu0 0.0
    %1820 = vmatpush1.msra.mxu0 0.0
    %1821 = vmatprep.subr.mxu0 0.0
    %1822 = vmatpush1.msra.mxu0 0.0
    %1823 = vmatprep.subr.mxu0 0.0
    %1824 = vmatpush1.msra.mxu0 0.0
    %1825 = vmatprep.subr.mxu0 0.0
    %1826 = vmatpush1.msra.mxu0 0.0
    %1827 = vmatprep.subr.mxu0 0.0
    %1828 = vmatpush1.msra.mxu0 0.0
    %1829 = vmatprep.subr.mxu0 0.0
    %1830 = vmatpush1.msra.mxu0 0.0
    %1831 = vmatprep.subr.mxu0 0.0
    %1832 = vmatpush1.msra.mxu0 0.0
    %1833 = vmatprep.subr.mxu0 0.0
    %1834 = vmatpush1.msra.mxu0 0.0
    %1835 = vmatprep.subr.mxu0 0.0
    %1836 = vmatpush1.msra.mxu0 0.0
    %1837 = vmatprep.subr.mxu0 0.0
    %1838 = vmatpush1.msra.mxu0 0.0
    %1839 = vmatprep.subr.mxu0 0.0
    %1840 = vmatpush1.msra.mxu0 0.0
    %1841 = vmatprep.subr.mxu0 0.0
    %1842 = vmatpush1.msra.mxu0 0.0
    %1843 = vmatprep.subr.mxu0 0.0
    %1844 = vmatpush1.msra.mxu0 0.0
    %1845 = vmatprep.subr.mxu0 0.0
    %1846 = vmatpush1.msra.mxu0 0.0
    %1847 = vmatprep.subr.mxu0 0.0
    %1848 = vmatpush1.msra.mxu0 0.0
    %1849 = vmatprep.subr.mxu0 0.0
    %1850 = vmatpush1.msra.mxu0 0.0
    %1851 = vmatprep.subr.mxu0 0.0
    %1852 = vmatpush1.msra.mxu0 0.0
    %1853 = vmatprep.subr.mxu0 0.0
    %1854 = vmatpush1.msra.mxu0 0.0
    %1855 = vmatprep.subr.mxu0 0.0
    %1856 = vmatpush1.msra.mxu0 0.0
    %1857 = vmatprep.subr.mxu0 0.0
    %1858 = vmatpush1.msra.mxu0 0.0
    %1859 = vmatprep.subr.mxu0 0.0
    %1860 = vmatpush1.msra.mxu0 0.0
    %1861 = vmatprep.subr.mxu0 0.0
    %1862 = vmatpush1.msra.mxu0 0.0
    %1863 = vmatprep.subr.mxu0 0.0
    %1864 = vmatpush1.msra.mxu0 0.0
    %1865 = vmatprep.mubr.f32.mxu0 0.0
    %1866 = vmatmul.mubr.f32.gmra.mrb[0].mxu0 %v1799
    %v1867 = vpop.f32.mrb[0].mxu0
    %v1868 = vadd.f32 0.0, %v1867
    %v1869 = vpop.f32.mrb[0].mxu0
    %1870 = vdwg.mxu0
    %v1871 = vadd.f32 %v1630, %v1868
    %1872 = vrot.lane.b32.xlu0 %v165, 104
    %v1873 = vpop.permute.xlu0 %1872
    %1874 = vrot.lane.b32.xlu0 %v165, 72
    %v1875 = vpop.permute.xlu0 %1874
    %v1876 = vsel %vm183, %v1873, 0
    %v1878 = vsel %vm183, %v1875, 0
    %1880 = vmatprep.subr.mxu0 0.0
    %1881 = vmatpush1.xpose.msra.mxu0 %v1878
    %1882 = vmatprep.subr.mxu0 0.0
    %1883 = vmatpush1.xpose.msra.mxu0 0.0
    %1884 = vmatprep.subr.mxu0 0.0
    %1885 = vmatpush1.xpose.msra.mxu0 0.0
    %1886 = vmatprep.subr.mxu0 0.0
    %1887 = vmatpush1.xpose.msra.mxu0 0.0
    %1888 = vmatprep.subr.mxu0 0.0
    %1889 = vmatpush1.xpose.msra.mxu0 0.0
    %1890 = vmatprep.subr.mxu0 0.0
    %1891 = vmatpush1.xpose.msra.mxu0 0.0
    %1892 = vmatprep.subr.mxu0 0.0
    %1893 = vmatpush1.xpose.msra.mxu0 0.0
    %1894 = vmatprep.subr.mxu0 0.0
    %1895 = vmatpush1.xpose.msra.mxu0 0.0
    %1896 = vmatprep.subr.mxu0 0.0
    %1897 = vmatpush1.xpose.msra.mxu0 0.0
    %1898 = vmatprep.subr.mxu0 0.0
    %1899 = vmatpush1.xpose.msra.mxu0 0.0
    %1900 = vmatprep.subr.mxu0 0.0
    %1901 = vmatpush1.xpose.msra.mxu0 0.0
    %1902 = vmatprep.subr.mxu0 0.0
    %1903 = vmatpush1.xpose.msra.mxu0 0.0
    %1904 = vmatprep.subr.mxu0 0.0
    %1905 = vmatpush1.xpose.msra.mxu0 0.0
    %1906 = vmatprep.subr.mxu0 0.0
    %1907 = vmatpush1.xpose.msra.mxu0 0.0
    %1908 = vmatprep.subr.mxu0 0.0
    %1909 = vmatpush1.xpose.msra.mxu0 0.0
    %1910 = vmatprep.subr.mxu0 0.0
    %1911 = vmatpush1.xpose.msra.mxu0 0.0
    %1912 = vmatprep.subr.mxu0 0.0
    %1913 = vmatpush1.xpose.msra.mxu0 0.0
    %1914 = vmatprep.subr.mxu0 0.0
    %1915 = vmatpush1.xpose.msra.mxu0 0.0
    %1916 = vmatprep.subr.mxu0 0.0
    %1917 = vmatpush1.xpose.msra.mxu0 0.0
    %1918 = vmatprep.subr.mxu0 0.0
    %1919 = vmatpush1.xpose.msra.mxu0 0.0
    %1920 = vmatprep.subr.mxu0 0.0
    %1921 = vmatpush1.xpose.msra.mxu0 0.0
    %1922 = vmatprep.subr.mxu0 0.0
    %1923 = vmatpush1.xpose.msra.mxu0 0.0
    %1924 = vmatprep.subr.mxu0 0.0
    %1925 = vmatpush1.xpose.msra.mxu0 0.0
    %1926 = vmatprep.subr.mxu0 0.0
    %1927 = vmatpush1.xpose.msra.mxu0 0.0
    %1928 = vmatprep.subr.mxu0 0.0
    %1929 = vmatpush1.xpose.msra.mxu0 0.0
    %1930 = vmatprep.subr.mxu0 0.0
    %1931 = vmatpush1.xpose.msra.mxu0 0.0
    %1932 = vmatprep.subr.mxu0 0.0
    %1933 = vmatpush1.xpose.msra.mxu0 0.0
    %1934 = vmatprep.subr.mxu0 0.0
    %1935 = vmatpush1.xpose.msra.mxu0 0.0
    %1936 = vmatprep.subr.mxu0 0.0
    %1937 = vmatpush1.xpose.msra.mxu0 0.0
    %1938 = vmatprep.subr.mxu0 0.0
    %1939 = vmatpush1.xpose.msra.mxu0 0.0
    %1940 = vmatprep.subr.mxu0 0.0
    %1941 = vmatpush1.xpose.msra.mxu0 0.0
    %1942 = vmatprep.subr.mxu0 0.0
    %1943 = vmatpush1.xpose.msra.mxu0 0.0
    %1944 = vmatprep.mubr.f32.mxu0 0.0
    %1945 = vmatmul.mubr.f32.gmra.mrb[0].mxu0 %v1876
    %v1946 = vpop.f32.mrb[0].mxu0
    %v1947 = vadd.f32 %v1157, %v1946
    %v1948 = vpop.f32.mrb[0].mxu0
    %1949 = vdwg.mxu0
    %v1950 = vsel %vm183, %v1947, -inf
    %1951 = vmax.xlane.f32.xlu0 %v1950
    %v1952 = vpop.xlane.xlu0 %1951
    %v1953 = vsub.f32 %v1947, %v1952
    %v1954 = vmul.f32 %v1953, 1.442695
    %v1955 = vpow.pop %v1954
    %v1956 = vsel %vm183, %v1955, 0.0
    %1957 = vadd.xlane.f32.xlu0 %v1956
    %v1958 = vpop.xlane.xlu0 %1957
    %v1959 = vrcp.pop %v1958
    %v1960 = vmul.f32 %v1955, %v1959
    %1961 = vrot.lane.b32.xlu0 %v165, 40
    %v1962 = vpop.permute.xlu0 %1961
    %v1965 = vsel %vm183, %v1960, 0
    %1967 = vmatprep.subr.mxu0 0.0
    %1968 = vmatpush1.msra.mxu0 %v1962
    %1969 = vmatprep.subr.mxu0 0.0
    %1970 = vmatpush1.msra.mxu0 0.0
    %1971 = vmatprep.subr.mxu0 0.0
    %1972 = vmatpush1.msra.mxu0 0.0
    %1973 = vmatprep.subr.mxu0 0.0
    %1974 = vmatpush1.msra.mxu0 0.0
    %1975 = vmatprep.subr.mxu0 0.0
    %1976 = vmatpush1.msra.mxu0 0.0
    %1977 = vmatprep.subr.mxu0 0.0
    %1978 = vmatpush1.msra.mxu0 0.0
    %1979 = vmatprep.subr.mxu0 0.0
    %1980 = vmatpush1.msra.mxu0 0.0
    %1981 = vmatprep.subr.mxu0 0.0
    %1982 = vmatpush1.msra.mxu0 0.0
    %1983 = vmatprep.subr.mxu0 0.0
    %1984 = vmatpush1.msra.mxu0 0.0
    %1985 = vmatprep.subr.mxu0 0.0
    %1986 = vmatpush1.msra.mxu0 0.0
    %1987 = vmatprep.subr.mxu0 0.0
    %1988 = vmatpush1.msra.mxu0 0.0
    %1989 = vmatprep.subr.mxu0 0.0
    %1990 = vmatpush1.msra.mxu0 0.0
    %1991 = vmatprep.subr.mxu0 0.0
    %1992 = vmatpush1.msra.mxu0 0.0
    %1993 = vmatprep.subr.mxu0 0.0
    %1994 = vmatpush1.msra.mxu0 0.0
    %1995 = vmatprep.subr.mxu0 0.0
    %1996 = vmatpush1.msra.mxu0 0.0
    %1997 = vmatprep.subr.mxu0 0.0
    %1998 = vmatpush1.msra.mxu0 0.0
    %1999 = vmatprep.subr.mxu0 0.0
    %2000 = vmatpush1.msra.mxu0 0.0
    %2001 = vmatprep.subr.mxu0 0.0
    %2002 = vmatpush1.msra.mxu0 0.0
    %2003 = vmatprep.subr.mxu0 0.0
    %2004 = vmatpush1.msra.mxu0 0.0
    %2005 = vmatprep.subr.mxu0 0.0
    %2006 = vmatpush1.msra.mxu0 0.0
    %2007 = vmatprep.subr.mxu0 0.0
    %2008 = vmatpush1.msra.mxu0 0.0
    %2009 = vmatprep.subr.mxu0 0.0
    %2010 = vmatpush1.msra.mxu0 0.0
    %2011 = vmatprep.subr.mxu0 0.0
    %2012 = vmatpush1.msra.mxu0 0.0
    %2013 = vmatprep.subr.mxu0 0.0
    %2014 = vmatpush1.msra.mxu0 0.0
    %2015 = vmatprep.subr.mxu0 0.0
    %2016 = vmatpush1.msra.mxu0 0.0
    %2017 = vmatprep.subr.mxu0 0.0
    %2018 = vmatpush1.msra.mxu0 0.0
    %2019 = vmatprep.subr.mxu0 0.0
    %2020 = vmatpush1.msra.mxu0 0.0
    %2021 = vmatprep.subr.mxu0 0.0
    %2022 = vmatpush1.msra.mxu0 0.0
    %2023 = vmatprep.subr.mxu0 0.0
    %2024 = vmatpush1.msra.mxu0 0.0
    %2025 = vmatprep.subr.mxu0 0.0
    %2026 = vmatpush1.msra.mxu0 0.0
    %2027 = vmatprep.subr.mxu0 0.0
    %2028 = vmatpush1.msra.mxu0 0.0
    %2029 = vmatprep.subr.mxu0 0.0
    %2030 = vmatpush1.msra.mxu0 0.0
    %2031 = vmatprep.mubr.f32.mxu0 0.0
    %2032 = vmatmul.mubr.f32.gmra.mrb[0].mxu0 %v1965
    %v2033 = vpop.f32.mrb[0].mxu0
    %v2034 = vadd.f32 0.0, %v2033
    %v2035 = vpop.f32.mrb[0].mxu0
    %2036 = vdwg.mxu0
    %v2038 = vsel %vm183, %v2034, 0
    %2040 = vmatprep.subr.mxu0 0.0
    %2041 = vmatpush1.msra.mxu0 %v171
    %2042 = vmatprep.subr.mxu0 0.0
    %2043 = vmatpush1.msra.mxu0 0.0
    %2044 = vmatprep.subr.mxu0 0.0
    %2045 = vmatpush1.msra.mxu0 0.0
    %2046 = vmatprep.subr.mxu0 0.0
    %2047 = vmatpush1.msra.mxu0 0.0
    %2048 = vmatprep.subr.mxu0 0.0
    %2049 = vmatpush1.msra.mxu0 0.0
    %2050 = vmatprep.subr.mxu0 0.0
    %2051 = vmatpush1.msra.mxu0 0.0
    %2052 = vmatprep.subr.mxu0 0.0
    %2053 = vmatpush1.msra.mxu0 0.0
    %2054 = vmatprep.subr.mxu0 0.0
    %2055 = vmatpush1.msra.mxu0 0.0
    %2056 = vmatprep.subr.mxu0 0.0
    %2057 = vmatpush1.msra.mxu0 0.0
    %2058 = vmatprep.subr.mxu0 0.0
    %2059 = vmatpush1.msra.mxu0 0.0
    %2060 = vmatprep.subr.mxu0 0.0
    %2061 = vmatpush1.msra.mxu0 0.0
    %2062 = vmatprep.subr.mxu0 0.0
    %2063 = vmatpush1.msra.mxu0 0.0
    %2064 = vmatprep.subr.mxu0 0.0
    %2065 = vmatpush1.msra.mxu0 0.0
    %2066 = vmatprep.subr.mxu0 0.0
    %2067 = vmatpush1.msra.mxu0 0.0
    %2068 = vmatprep.subr.mxu0 0.0
    %2069 = vmatpush1.msra.mxu0 0.0
    %2070 = vmatprep.subr.mxu0 0.0
    %2071 = vmatpush1.msra.mxu0 0.0
    %2072 = vmatprep.subr.mxu0 0.0
    %2073 = vmatpush1.msra.mxu0 0.0
    %2074 = vmatprep.subr.mxu0 0.0
    %2075 = vmatpush1.msra.mxu0 0.0
    %2076 = vmatprep.subr.mxu0 0.0
    %2077 = vmatpush1.msra.mxu0 0.0
    %2078 = vmatprep.subr.mxu0 0.0
    %2079 = vmatpush1.msra.mxu0 0.0
    %2080 = vmatprep.subr.mxu0 0.0
    %2081 = vmatpush1.msra.mxu0 0.0
    %2082 = vmatprep.subr.mxu0 0.0
    %2083 = vmatpush1.msra.mxu0 0.0
    %2084 = vmatprep.subr.mxu0 0.0
    %2085 = vmatpush1.msra.mxu0 0.0
    %2086 = vmatprep.subr.mxu0 0.0
    %2087 = vmatpush1.msra.mxu0 0.0
    %2088 = vmatprep.subr.mxu0 0.0
    %2089 = vmatpush1.msra.mxu0 0.0
    %2090 = vmatprep.subr.mxu0 0.0
    %2091 = vmatpush1.msra.mxu0 0.0
    %2092 = vmatprep.subr.mxu0 0.0
    %2093 = vmatpush1.msra.mxu0 0.0
    %2094 = vmatprep.subr.mxu0 0.0
    %2095 = vmatpush1.msra.mxu0 0.0
    %2096 = vmatprep.subr.mxu0 0.0
    %2097 = vmatpush1.msra.mxu0 0.0
    %2098 = vmatprep.subr.mxu0 0.0
    %2099 = vmatpush1.msra.mxu0 0.0
    %2100 = vmatprep.subr.mxu0 0.0
    %2101 = vmatpush1.msra.mxu0 0.0
    %2102 = vmatprep.subr.mxu0 0.0
    %2103 = vmatpush1.msra.mxu0 0.0
    %2104 = vmatprep.mubr.f32.mxu0 0.0
    %2105 = vmatmul.mubr.f32.gmra.mrb[0].mxu0 %v2038
    %v2106 = vpop.f32.mrb[0].mxu0
    %v2107 = vadd.f32 0.0, %v2106
    %v2108 = vpop.f32.mrb[0].mxu0
    %2109 = vdwg.mxu0
    %v2110 = vadd.f32 %v1871, %v2107
    %v2111 = vadd.f32 %v2110, %v1138
    %v2112 = vlaneseq
    %v2113 = vshrl.u32 %v2112, 7
    %v2114 = vsub.s32 0, %v2113
    %v2115 = vrot.slane %v1151, %v2114
    %2117 = vbcast.lane.b32.xlu0 %v2115, 256
    %v2118 = vpop.permute.xlu0 %2117
    %v2119 = vmul.f32 %v2111, %v2118
    %2120 = vst.msk [vmem:[#allocation8 + $0x8] sm:$0xff] %vm1149, %v2119
    // Predicated region
    $region38: #{tpu_custom_call.1} parent=1 // pred_check
      _
    $region39: #{tpu_custom_call.1} parent=1 // pred_check_branch
      %2122 = sbr.rel (0) target = $region41
    $region40: #{tpu_custom_call.1} parent=1 // pred_region
      %s2124 = ssub.s32 256, 256
      %2125 = vsyncadd [#allocation4], %s2124
      %s2126 = sshll.u32 [#allocation8], 4
      %s2127 = int_to_ptr.vmem [resolvable:$true] %s2126
      %2132 = dma.vmem_to_hbm [thread:$0]  %s2127, 256, %s6, [#allocation4], 128, 128, 8
    $region41: #{tpu_custom_call.1} parent=1 // pred_fallthru
      _
    // Predicated region
    $region42: #{tpu_custom_call.1} parent=1 // pred_check
      _
    $region43: #{tpu_custom_call.1} parent=1 // pred_check_branch
      %2134 = sbr.rel (0) target = $region45
    $region44: #{tpu_custom_call.1} parent=1 // pred_region
      %2135 = dma.done [#allocation4], 256
    $region45: #{tpu_custom_call.1} parent=1 // pred_fallthru
      _
    %2136 = vsyncpa [#allocation3], 1
    %2137 = vsyncpa [#allocation6], 1
    %2138 = vsyncpa [#allocation4], 1

</llo_original>
